<compile_context>
chip_gen: v5e
topology: v5e:2x2
jax: 0.10.0
libtpu: 0.0.40
codegen_flags: <defaults>
</compile_context>

<pallas_src>
import jax
import jax.numpy as jnp
from jax import lax
from jax.experimental import pallas as pl
from jax.experimental.pallas import tpu as pltpu


# ------------------------------ kernel body ---------------------------------
def _make_kernel(matmul_dtype):
    f32 = jnp.float32

    def mm(a, b):
        return jnp.dot(a.astype(matmul_dtype), b.astype(matmul_dtype),
                       preferred_element_type=f32)

    def conv3(a_prev, a, a_next, w_ref):
        # w_ref: (3, Win*Cin, Wout*Cout) block-Toeplitz weights, one per dy tap.
        return (mm(a_prev, w_ref[0]) + mm(a, w_ref[1]) + mm(a_next, w_ref[2]))

    def kernel(g_ref, x_ref,
               s1_ref, t1_ref, wge_ref, wgo_ref, b1_ref,
               dng_ref, upg_ref, sele_ref, selo_ref,
               s2_ref, t2_ref, wx_ref, b2_ref, dnx_ref, upx_ref,
               s3_ref, t3_ref, wgc_ref, b3_ref,
               y_ref):
        # ---- g path: BN -> ReLU -> Conv3x3 -> MaxPool(2, 2) -----------------
        a_g = jnp.maximum(g_ref[...] * s1_ref[...] + t1_ref[...], 0.0)
        g_prev = mm(dng_ref[...], a_g)     # row above (zero at each image top)
        g_next = mm(upg_ref[...], a_g)     # row below (zero at each image bottom)
        ge = conv3(g_prev, a_g, g_next, wge_ref)   # even output columns
        go = conv3(g_prev, a_g, g_next, wgo_ref)   # odd output columns
        cp = jnp.maximum(ge, go)                   # 2x1 max-pool along W (in regs)
        g_pool = jnp.maximum(mm(sele_ref[...], cp),
                             mm(selo_ref[...], cp))  # 2x1 max-pool along H
        g_pool = g_pool + b1_ref[...]              # bias commutes with max-pool

        # ---- x path: BN -> ReLU -> Conv3x3 ----------------------------------
        x_in = x_ref[...]                  # read once; reused for the final mul
        a_x = jnp.maximum(x_in * s2_ref[...] + t2_ref[...], 0.0)
        c_x = conv3(mm(dnx_ref[...], a_x), a_x, mm(upx_ref[...], a_x), wx_ref)
        c_x = c_x + b2_ref[...]

        # ---- gc path: (g_pool + x_conv) -> BN -> ReLU -> Conv3x3 -------------
        a_gc = jnp.maximum((g_pool + c_x) * s3_ref[...] + t3_ref[...], 0.0)
        c_gc = conv3(mm(dnx_ref[...], a_gc), a_gc, mm(upx_ref[...], a_gc),
                     wgc_ref)
        c_gc = c_gc + b3_ref[...]

        # ---- y = gc_conv * x --------------------------------------------------
        y_ref[...] = (c_gc * x_in).astype(y_ref.dtype)

    return kernel


# ----------------------- wrapper-side constant builders ----------------------
def _toeplitz_conv_weight(w_hwio, w_in, out_cols):
    """Fold dx taps + width zero-padding of a 3x3 'same' conv into matmul weights.

    Returns (3, w_in*ci, n_out*co) with
      T[dy][u*ci + c, j*co + o] = w_hwio[dy, u - out_cols[j] + 1, c, o]
    when the dx index is in [0, 3), else 0 (== zero padding along W).
    """
    kh, kw, ci, co = w_hwio.shape
    u = jnp.arange(w_in)
    xs = jnp.asarray(out_cols)
    dx = u[:, None] - xs[None, :] + 1                       # (w_in, n_out)
    valid = (dx >= 0) & (dx < kw)
    dx_c = jnp.clip(dx, 0, kw - 1)
    wt = w_hwio[:, dx_c, :, :]                              # (3, w_in, n_out, ci, co)
    wt = jnp.where(valid[None, :, :, None, None], wt, 0.0)
    wt = jnp.transpose(wt, (0, 1, 3, 2, 4))                 # (3, w_in, ci, n_out, co)
    return wt.reshape(kh, w_in * ci, int(xs.shape[0]) * co)


def _row_shift_mats(h, bt):
    """0/1 matrices: (dn @ a)[r] = a[r-1] (0 at image top), (up @ a)[r] = a[r+1]."""
    m = bt * h
    r = jnp.arange(m)
    dn = (((r[:, None] - 1) == r[None, :]) &
          ((r % h) != 0)[:, None]).astype(jnp.float32)
    up = (((r[:, None] + 1) == r[None, :]) &
          ((r % h) != (h - 1))[:, None]).astype(jnp.float32)
    return dn, up


def _pool_row_select(hh, bt):
    """Selection matrices picking even / odd rows of the pre-pool g-conv output."""
    m_out = bt * hh
    k = jnp.arange(m_out)
    r = jnp.arange(2 * m_out)
    se = (r[None, :] == 2 * k[:, None]).astype(jnp.float32)
    so = (r[None, :] == 2 * k[:, None] + 1).astype(jnp.float32)
    return se, so


def _full_spec(a):
    nd = a.ndim
    return pl.BlockSpec(a.shape, lambda n, nd=nd: (0,) * nd)


def _pick_batch_block(n, max_bt=8):
    bt = 1
    for cand in range(1, min(n, max_bt) + 1):
        if n % cand == 0 and n // cand >= 2:   # keep >=2 grid steps for 2 TCs
            bt = cand
    return bt


# --------------------------------- wrapper -----------------------------------
def attention_block(g_nchw, x_nchw, params, *, batch_block=None,
                    matmul_dtype=jnp.float32):
    """NCHW in / NCHW out; the Pallas kernel runs on lane-packed (rows, W*C)."""
    g = jnp.transpose(g_nchw, (0, 2, 3, 1)).astype(jnp.float32)   # NHWC
    x = jnp.transpose(x_nchw, (0, 2, 3, 1)).astype(jnp.float32)
    N, H, W, Cg = g.shape
    Nx, Hh, Wh, Cx = x.shape
    assert N == Nx and H == 2 * Hh and W == 2 * Wh
    Co = Cx

    bt = _pick_batch_block(N) if batch_block is None else batch_block
    assert N % bt == 0
    grid = (N // bt,)

    # lane-pack (W, C) -> 2-D slabs
    g2d = g.reshape(N * H, W * Cg)
    x2d = x.reshape(N * Hh, Wh * Cx)

    # ---- constant (weight-side) preprocessing --------------------------------
    s1 = jnp.tile(params['s1'], W)[None, :]
    t1 = jnp.tile(params['t1'], W)[None, :]
    s2 = jnp.tile(params['s2'], Wh)[None, :]
    t2 = jnp.tile(params['t2'], Wh)[None, :]
    s3 = jnp.tile(params['s3'], Wh)[None, :]
    t3 = jnp.tile(params['t3'], Wh)[None, :]

    wge = _toeplitz_conv_weight(params['w1'], W, jnp.arange(0, W, 2))  # even cols
    wgo = _toeplitz_conv_weight(params['w1'], W, jnp.arange(1, W, 2))  # odd cols
    wx = _toeplitz_conv_weight(params['w2'], Wh, jnp.arange(Wh))
    wgc = _toeplitz_conv_weight(params['w3'], Wh, jnp.arange(Wh))
    b1 = jnp.tile(params['b1'], Wh)[None, :]
    b2 = jnp.tile(params['b2'], Wh)[None, :]
    b3 = jnp.tile(params['b3'], Wh)[None, :]

    dng, upg = _row_shift_mats(H, bt)
    dnx, upx = _row_shift_mats(Hh, bt)
    sele, selo = _pool_row_select(Hh, bt)

    consts = [s1, t1, wge, wgo, b1, dng, upg, sele, selo,
              s2, t2, wx, b2, dnx, upx,
              s3, t3, wgc, b3]

    in_specs = [pl.BlockSpec((bt * H, W * Cg), lambda n: (n, 0)),
                pl.BlockSpec((bt * Hh, Wh * Cx), lambda n: (n, 0))]
    in_specs += [_full_spec(c) for c in consts]
    out_spec = pl.BlockSpec((bt * Hh, Wh * Co), lambda n: (n, 0))

    # Explicit VMEM budget sized to the per-step footprint (double-buffered
    # data blocks + resident constants) with generous headroom.
    block_bytes = 4 * (bt * H * W * Cg + bt * Hh * Wh * Cx + bt * Hh * Wh * Co)
    const_bytes = 4 * sum(int(c.size) for c in consts)
    vmem_limit = int(min(60 * 2**20,
                         max(8 * 2**20, 4 * (block_bytes + const_bytes))))

    grid_spec = pltpu.PrefetchScalarGridSpec(
        num_scalar_prefetch=0,
        grid=grid,
        in_specs=in_specs,
        out_specs=out_spec,
    )

    y2d = pl.pallas_call(
        _make_kernel(matmul_dtype),
        out_shape=jax.ShapeDtypeStruct((N * Hh, Wh * Co), jnp.float32),
        grid_spec=grid_spec,
        compiler_params=pltpu.CompilerParams(
            dimension_semantics=("parallel",),
            vmem_limit_bytes=vmem_limit),
    )(g2d, x2d, *consts)

    y = y2d.reshape(N, Hh, Wh, Co)
    return jnp.transpose(y, (0, 3, 1, 2))


# ----------------------------- parameter setup -------------------------------
def _fold_bn(gamma, beta, mean, var, eps=1e-5):
    scale = gamma / jnp.sqrt(var + eps)
    shift = beta - mean * scale
    return scale, shift


def _init_params(key, cg, cx):
    co = cx
    ks = jax.random.split(key, 6)

    def bn(k, c):
        k1, k2, k3, k4 = jax.random.split(k, 4)
        gamma = jax.random.uniform(k1, (c,), jnp.float32, 0.5, 1.5)
        beta = 0.1 * jax.random.normal(k2, (c,), jnp.float32)
        mean = 0.1 * jax.random.normal(k3, (c,), jnp.float32)
        var = jax.random.uniform(k4, (c,), jnp.float32, 0.5, 1.5)
        return _fold_bn(gamma, beta, mean, var)

    def conv(k, ci, co_):
        k1, k2 = jax.random.split(k)
        bound = 1.0 / float(jnp.sqrt(ci * 9.0))
        w_oihw = jax.random.uniform(k1, (co_, ci, 3, 3), jnp.float32,
                                    -bound, bound)            # PyTorch OIHW
        b = jax.random.uniform(k2, (co_,), jnp.float32, -bound, bound)
        return jnp.transpose(w_oihw, (2, 3, 1, 0)), b          # HWIO, (co,)

    s1, t1 = bn(ks[0], cg); w1, b1 = conv(ks[1], cg, co)
    s2, t2 = bn(ks[2], cx); w2, b2 = conv(ks[3], cx, co)
    s3, t3 = bn(ks[4], co); w3, b3 = conv(ks[5], co, co)
    return dict(s1=s1, t1=t1, w1=w1, b1=b1,
                s2=s2, t2=t2, w2=w2, b2=b2,
                s3=s3, t3=t3, w3=w3, b3=b3)


# ---------------------------- pure-JAX reference -----------------------------
def reference_forward(g_nchw, x_nchw, p):
    g = jnp.transpose(g_nchw, (0, 2, 3, 1)).astype(jnp.float32)
    x = jnp.transpose(x_nchw, (0, 2, 3, 1)).astype(jnp.float32)
    dn = ('NHWC', 'HWIO', 'NHWC')

    def conv(a, w, b):
        return lax.conv_general_dilated(
            a, w, (1, 1), 'SAME', dimension_numbers=dn,
            precision=lax.Precision.HIGHEST) + b

    a1 = jax.nn.relu(g * p['s1'] + p['t1'])
    c1 = conv(a1, p['w1'], p['b1'])
    N, H, W, Co = c1.shape
    g_pool = c1.reshape(N, H // 2, 2, W // 2, 2, Co).max(axis=(2, 4))

    a2 = jax.nn.relu(x * p['s2'] + p['t2'])
    c2 = conv(a2, p['w2'], p['b2'])

    a3 = jax.nn.relu((g_pool + c2) * p['s3'] + p['t3'])
    c3 = conv(a3, p['w3'], p['b3'])
    y = c3 * x
    return jnp.transpose(y, (0, 3, 1, 2))


if __name__ == "__main__":
    key = jax.random.PRNGKey(0)
    k_g, k_x, k_p = jax.random.split(key, 3)

    in_c = (4, 8)                     # (g channels, x channels); out_c = in_c[1]
    N, H, W = 2, 16, 16               # g spatial; x spatial is H//2 x W//2
    g = jax.random.normal(k_g, (N, in_c[0], H, W), jnp.float32)
    x = jax.random.normal(k_x, (N, in_c[1], H // 2, W // 2), jnp.float32)
    params = _init_params(k_p, in_c[0], in_c[1])

    y = attention_block(g, x, params)
    y = jax.block_until_ready(y)

    y_ref = reference_forward(g, x, params)
    assert y.shape == (N, in_c[1], H // 2, W // 2)
    err = float(jnp.max(jnp.abs(y - y_ref)))
    assert err < 2e-3, f"max abs err {err}"
    print("KERNEL_OK")
</pallas_src>

<mosaic_0001>
module attributes {stable_mosaic.version = 11 : i64} {
  func.func @kernel(%arg0: i32, %arg1: memref<16x64xf32, #tpu.memory_space<vmem>>, %arg2: memref<8x64xf32, #tpu.memory_space<vmem>>, %arg3: memref<1x64xf32, #tpu.memory_space<vmem>>, %arg4: memref<1x64xf32, #tpu.memory_space<vmem>>, %arg5: memref<3x64x64xf32, #tpu.memory_space<vmem>>, %arg6: memref<3x64x64xf32, #tpu.memory_space<vmem>>, %arg7: memref<1x64xf32, #tpu.memory_space<vmem>>, %arg8: memref<16x16xf32, #tpu.memory_space<vmem>>, %arg9: memref<16x16xf32, #tpu.memory_space<vmem>>, %arg10: memref<8x16xf32, #tpu.memory_space<vmem>>, %arg11: memref<8x16xf32, #tpu.memory_space<vmem>>, %arg12: memref<1x64xf32, #tpu.memory_space<vmem>>, %arg13: memref<1x64xf32, #tpu.memory_space<vmem>>, %arg14: memref<3x64x64xf32, #tpu.memory_space<vmem>>, %arg15: memref<1x64xf32, #tpu.memory_space<vmem>>, %arg16: memref<8x8xf32, #tpu.memory_space<vmem>>, %arg17: memref<8x8xf32, #tpu.memory_space<vmem>>, %arg18: memref<1x64xf32, #tpu.memory_space<vmem>>, %arg19: memref<1x64xf32, #tpu.memory_space<vmem>>, %arg20: memref<3x64x64xf32, #tpu.memory_space<vmem>>, %arg21: memref<1x64xf32, #tpu.memory_space<vmem>>, %arg22: memref<8x64xf32, #tpu.memory_space<vmem>>) attributes {dimension_semantics = [#tpu.dimension_semantics<parallel>], iteration_bounds = array<i64: 2>, scalar_prefetch = 0 : i64, scratch_operands = 0 : i64, tpu.core_type = #tpu.core_type<tc>, window_params = [{transform_indices = @transform_0, window_bounds = array<i64: 16, 64>}, {transform_indices = @transform_1, window_bounds = array<i64: 8, 64>}, {pipeline_mode = #tpu.pipeline_mode<synchronous>, transform_indices = @transform_2, window_bounds = array<i64: 1, 64>}, {pipeline_mode = #tpu.pipeline_mode<synchronous>, transform_indices = @transform_3, window_bounds = array<i64: 1, 64>}, {pipeline_mode = #tpu.pipeline_mode<synchronous>, transform_indices = @transform_4, window_bounds = array<i64: 3, 64, 64>}, {pipeline_mode = #tpu.pipeline_mode<synchronous>, transform_indices = @transform_5, window_bounds = array<i64: 3, 64, 64>}, {pipeline_mode = #tpu.pipeline_mode<synchronous>, transform_indices = @transform_6, window_bounds = array<i64: 1, 64>}, {pipeline_mode = #tpu.pipeline_mode<synchronous>, transform_indices = @transform_7, window_bounds = array<i64: 16, 16>}, {pipeline_mode = #tpu.pipeline_mode<synchronous>, transform_indices = @transform_8, window_bounds = array<i64: 16, 16>}, {pipeline_mode = #tpu.pipeline_mode<synchronous>, transform_indices = @transform_9, window_bounds = array<i64: 8, 16>}, {pipeline_mode = #tpu.pipeline_mode<synchronous>, transform_indices = @transform_10, window_bounds = array<i64: 8, 16>}, {pipeline_mode = #tpu.pipeline_mode<synchronous>, transform_indices = @transform_11, window_bounds = array<i64: 1, 64>}, {pipeline_mode = #tpu.pipeline_mode<synchronous>, transform_indices = @transform_12, window_bounds = array<i64: 1, 64>}, {pipeline_mode = #tpu.pipeline_mode<synchronous>, transform_indices = @transform_13, window_bounds = array<i64: 3, 64, 64>}, {pipeline_mode = #tpu.pipeline_mode<synchronous>, transform_indices = @transform_14, window_bounds = array<i64: 1, 64>}, {pipeline_mode = #tpu.pipeline_mode<synchronous>, transform_indices = @transform_15, window_bounds = array<i64: 8, 8>}, {pipeline_mode = #tpu.pipeline_mode<synchronous>, transform_indices = @transform_16, window_bounds = array<i64: 8, 8>}, {pipeline_mode = #tpu.pipeline_mode<synchronous>, transform_indices = @transform_17, window_bounds = array<i64: 1, 64>}, {pipeline_mode = #tpu.pipeline_mode<synchronous>, transform_indices = @transform_18, window_bounds = array<i64: 1, 64>}, {pipeline_mode = #tpu.pipeline_mode<synchronous>, transform_indices = @transform_19, window_bounds = array<i64: 3, 64, 64>}, {pipeline_mode = #tpu.pipeline_mode<synchronous>, transform_indices = @transform_20, window_bounds = array<i64: 1, 64>}, {transform_indices = @transform_21, window_bounds = array<i64: 8, 64>}]} {
    %c0 = arith.constant 0 : index
    %c0_0 = arith.constant 0 : index
    %0 = vector.load %arg1[%c0, %c0_0] : memref<16x64xf32, #tpu.memory_space<vmem>>, vector<16x64xf32>
    %c0_1 = arith.constant 0 : index
    %c0_2 = arith.constant 0 : index
    %1 = vector.load %arg3[%c0_1, %c0_2] : memref<1x64xf32, #tpu.memory_space<vmem>>, vector<1x64xf32>
    %2 = vector.broadcast %1 : vector<1x64xf32> to vector<16x64xf32>
    %3 = arith.mulf %0, %2 : vector<16x64xf32>
    %c0_3 = arith.constant 0 : index
    %c0_4 = arith.constant 0 : index
    %4 = vector.load %arg4[%c0_3, %c0_4] : memref<1x64xf32, #tpu.memory_space<vmem>>, vector<1x64xf32>
    %5 = vector.broadcast %4 : vector<1x64xf32> to vector<16x64xf32>
    %6 = arith.addf %3, %5 : vector<16x64xf32>
    %cst = arith.constant 0.000000e+00 : f32
    %7 = vector.broadcast %cst : f32 to vector<16x64xf32>
    %8 = arith.maximumf %6, %7 : vector<16x64xf32>
    %c0_5 = arith.constant 0 : index
    %c0_6 = arith.constant 0 : index
    %9 = vector.load %arg8[%c0_5, %c0_6] : memref<16x16xf32, #tpu.memory_space<vmem>>, vector<16x16xf32>
    %cst_7 = arith.constant dense<0.000000e+00> : vector<16x64xf32>
    %10 = tpu.matmul %9, %8, %cst_7 {dimension_numbers = #tpu.dot_dimension_numbers<[1], [0], [0], [1], [0, 0, 1, 1], [], []>} : vector<16x16xf32>, vector<16x64xf32>, vector<16x64xf32> -> vector<16x64xf32>
    %c0_8 = arith.constant 0 : index
    %c0_9 = arith.constant 0 : index
    %11 = vector.load %arg9[%c0_8, %c0_9] : memref<16x16xf32, #tpu.memory_space<vmem>>, vector<16x16xf32>
    %cst_10 = arith.constant dense<0.000000e+00> : vector<16x64xf32>
    %12 = tpu.matmul %11, %8, %cst_10 {dimension_numbers = #tpu.dot_dimension_numbers<[1], [0], [0], [1], [0, 0, 1, 1], [], []>} : vector<16x16xf32>, vector<16x64xf32>, vector<16x64xf32> -> vector<16x64xf32>
    %c0_11 = arith.constant 0 : index
    %c0_12 = arith.constant 0 : index
    %c0_13 = arith.constant 0 : index
    %13 = vector.load %arg5[%c0_11, %c0_12, %c0_13] : memref<3x64x64xf32, #tpu.memory_space<vmem>>, vector<1x64x64xf32>
    %14 = vector.shape_cast %13 : vector<1x64x64xf32> to vector<64x64xf32>
    %cst_14 = arith.constant dense<0.000000e+00> : vector<16x64xf32>
    %15 = tpu.matmul %10, %14, %cst_14 {dimension_numbers = #tpu.dot_dimension_numbers<[1], [0], [0], [1], [0, 0, 1, 1], [], []>} : vector<16x64xf32>, vector<64x64xf32>, vector<16x64xf32> -> vector<16x64xf32>
    %c1 = arith.constant 1 : index
    %c0_15 = arith.constant 0 : index
    %c0_16 = arith.constant 0 : index
    %16 = vector.load %arg5[%c1, %c0_15, %c0_16] : memref<3x64x64xf32, #tpu.memory_space<vmem>>, vector<1x64x64xf32>
    %17 = vector.shape_cast %16 : vector<1x64x64xf32> to vector<64x64xf32>
    %cst_17 = arith.constant dense<0.000000e+00> : vector<16x64xf32>
    %18 = tpu.matmul %8, %17, %cst_17 {dimension_numbers = #tpu.dot_dimension_numbers<[1], [0], [0], [1], [0, 0, 1, 1], [], []>} : vector<16x64xf32>, vector<64x64xf32>, vector<16x64xf32> -> vector<16x64xf32>
    %19 = arith.addf %15, %18 : vector<16x64xf32>
    %c2 = arith.constant 2 : index
    %c0_18 = arith.constant 0 : index
    %c0_19 = arith.constant 0 : index
    %20 = vector.load %arg5[%c2, %c0_18, %c0_19] : memref<3x64x64xf32, #tpu.memory_space<vmem>>, vector<1x64x64xf32>
    %21 = vector.shape_cast %20 : vector<1x64x64xf32> to vector<64x64xf32>
    %cst_20 = arith.constant dense<0.000000e+00> : vector<16x64xf32>
    %22 = tpu.matmul %12, %21, %cst_20 {dimension_numbers = #tpu.dot_dimension_numbers<[1], [0], [0], [1], [0, 0, 1, 1], [], []>} : vector<16x64xf32>, vector<64x64xf32>, vector<16x64xf32> -> vector<16x64xf32>
    %23 = arith.addf %19, %22 : vector<16x64xf32>
    %c0_21 = arith.constant 0 : index
    %c0_22 = arith.constant 0 : index
    %c0_23 = arith.constant 0 : index
    %24 = vector.load %arg6[%c0_21, %c0_22, %c0_23] : memref<3x64x64xf32, #tpu.memory_space<vmem>>, vector<1x64x64xf32>
    %25 = vector.shape_cast %24 : vector<1x64x64xf32> to vector<64x64xf32>
    %cst_24 = arith.constant dense<0.000000e+00> : vector<16x64xf32>
    %26 = tpu.matmul %10, %25, %cst_24 {dimension_numbers = #tpu.dot_dimension_numbers<[1], [0], [0], [1], [0, 0, 1, 1], [], []>} : vector<16x64xf32>, vector<64x64xf32>, vector<16x64xf32> -> vector<16x64xf32>
    %c1_25 = arith.constant 1 : index
    %c0_26 = arith.constant 0 : index
    %c0_27 = arith.constant 0 : index
    %27 = vector.load %arg6[%c1_25, %c0_26, %c0_27] : memref<3x64x64xf32, #tpu.memory_space<vmem>>, vector<1x64x64xf32>
    %28 = vector.shape_cast %27 : vector<1x64x64xf32> to vector<64x64xf32>
    %cst_28 = arith.constant dense<0.000000e+00> : vector<16x64xf32>
    %29 = tpu.matmul %8, %28, %cst_28 {dimension_numbers = #tpu.dot_dimension_numbers<[1], [0], [0], [1], [0, 0, 1, 1], [], []>} : vector<16x64xf32>, vector<64x64xf32>, vector<16x64xf32> -> vector<16x64xf32>
    %30 = arith.addf %26, %29 : vector<16x64xf32>
    %c2_29 = arith.constant 2 : index
    %c0_30 = arith.constant 0 : index
    %c0_31 = arith.constant 0 : index
    %31 = vector.load %arg6[%c2_29, %c0_30, %c0_31] : memref<3x64x64xf32, #tpu.memory_space<vmem>>, vector<1x64x64xf32>
    %32 = vector.shape_cast %31 : vector<1x64x64xf32> to vector<64x64xf32>
    %cst_32 = arith.constant dense<0.000000e+00> : vector<16x64xf32>
    %33 = tpu.matmul %12, %32, %cst_32 {dimension_numbers = #tpu.dot_dimension_numbers<[1], [0], [0], [1], [0, 0, 1, 1], [], []>} : vector<16x64xf32>, vector<64x64xf32>, vector<16x64xf32> -> vector<16x64xf32>
    %34 = arith.addf %30, %33 : vector<16x64xf32>
    %35 = arith.maximumf %23, %34 : vector<16x64xf32>
    %c0_33 = arith.constant 0 : index
    %c0_34 = arith.constant 0 : index
    %36 = vector.load %arg10[%c0_33, %c0_34] : memref<8x16xf32, #tpu.memory_space<vmem>>, vector<8x16xf32>
    %cst_35 = arith.constant dense<0.000000e+00> : vector<8x64xf32>
    %37 = tpu.matmul %36, %35, %cst_35 {dimension_numbers = #tpu.dot_dimension_numbers<[1], [0], [0], [1], [0, 0, 1, 1], [], []>} : vector<8x16xf32>, vector<16x64xf32>, vector<8x64xf32> -> vector<8x64xf32>
    %c0_36 = arith.constant 0 : index
    %c0_37 = arith.constant 0 : index
    %38 = vector.load %arg11[%c0_36, %c0_37] : memref<8x16xf32, #tpu.memory_space<vmem>>, vector<8x16xf32>
    %cst_38 = arith.constant dense<0.000000e+00> : vector<8x64xf32>
    %39 = tpu.matmul %38, %35, %cst_38 {dimension_numbers = #tpu.dot_dimension_numbers<[1], [0], [0], [1], [0, 0, 1, 1], [], []>} : vector<8x16xf32>, vector<16x64xf32>, vector<8x64xf32> -> vector<8x64xf32>
    %40 = arith.maximumf %37, %39 : vector<8x64xf32>
    %c0_39 = arith.constant 0 : index
    %c0_40 = arith.constant 0 : index
    %41 = vector.load %arg7[%c0_39, %c0_40] : memref<1x64xf32, #tpu.memory_space<vmem>>, vector<1x64xf32>
    %42 = vector.broadcast %41 : vector<1x64xf32> to vector<8x64xf32>
    %43 = arith.addf %40, %42 : vector<8x64xf32>
    %c0_41 = arith.constant 0 : index
    %c0_42 = arith.constant 0 : index
    %44 = vector.load %arg2[%c0_41, %c0_42] : memref<8x64xf32, #tpu.memory_space<vmem>>, vector<8x64xf32>
    %c0_43 = arith.constant 0 : index
    %c0_44 = arith.constant 0 : index
    %45 = vector.load %arg12[%c0_43, %c0_44] : memref<1x64xf32, #tpu.memory_space<vmem>>, vector<1x64xf32>
    %46 = vector.broadcast %45 : vector<1x64xf32> to vector<8x64xf32>
    %47 = arith.mulf %44, %46 : vector<8x64xf32>
    %c0_45 = arith.constant 0 : index
    %c0_46 = arith.constant 0 : index
    %48 = vector.load %arg13[%c0_45, %c0_46] : memref<1x64xf32, #tpu.memory_space<vmem>>, vector<1x64xf32>
    %49 = vector.broadcast %48 : vector<1x64xf32> to vector<8x64xf32>
    %50 = arith.addf %47, %49 : vector<8x64xf32>
    %cst_47 = arith.constant 0.000000e+00 : f32
    %51 = vector.broadcast %cst_47 : f32 to vector<8x64xf32>
    %52 = arith.maximumf %50, %51 : vector<8x64xf32>
    %c0_48 = arith.constant 0 : index
    %c0_49 = arith.constant 0 : index
    %53 = vector.load %arg16[%c0_48, %c0_49] : memref<8x8xf32, #tpu.memory_space<vmem>>, vector<8x8xf32>
    %cst_50 = arith.constant dense<0.000000e+00> : vector<8x64xf32>
    %54 = tpu.matmul %53, %52, %cst_50 {dimension_numbers = #tpu.dot_dimension_numbers<[1], [0], [0], [1], [0, 0, 1, 1], [], []>} : vector<8x8xf32>, vector<8x64xf32>, vector<8x64xf32> -> vector<8x64xf32>
    %c0_51 = arith.constant 0 : index
    %c0_52 = arith.constant 0 : index
    %55 = vector.load %arg17[%c0_51, %c0_52] : memref<8x8xf32, #tpu.memory_space<vmem>>, vector<8x8xf32>
    %cst_53 = arith.constant dense<0.000000e+00> : vector<8x64xf32>
    %56 = tpu.matmul %55, %52, %cst_53 {dimension_numbers = #tpu.dot_dimension_numbers<[1], [0], [0], [1], [0, 0, 1, 1], [], []>} : vector<8x8xf32>, vector<8x64xf32>, vector<8x64xf32> -> vector<8x64xf32>
    %c0_54 = arith.constant 0 : index
    %c0_55 = arith.constant 0 : index
    %c0_56 = arith.constant 0 : index
    %57 = vector.load %arg14[%c0_54, %c0_55, %c0_56] : memref<3x64x64xf32, #tpu.memory_space<vmem>>, vector<1x64x64xf32>
    %58 = vector.shape_cast %57 : vector<1x64x64xf32> to vector<64x64xf32>
    %cst_57 = arith.constant dense<0.000000e+00> : vector<8x64xf32>
    %59 = tpu.matmul %54, %58, %cst_57 {dimension_numbers = #tpu.dot_dimension_numbers<[1], [0], [0], [1], [0, 0, 1, 1], [], []>} : vector<8x64xf32>, vector<64x64xf32>, vector<8x64xf32> -> vector<8x64xf32>
    %c1_58 = arith.constant 1 : index
    %c0_59 = arith.constant 0 : index
    %c0_60 = arith.constant 0 : index
    %60 = vector.load %arg14[%c1_58, %c0_59, %c0_60] : memref<3x64x64xf32, #tpu.memory_space<vmem>>, vector<1x64x64xf32>
    %61 = vector.shape_cast %60 : vector<1x64x64xf32> to vector<64x64xf32>
    %cst_61 = arith.constant dense<0.000000e+00> : vector<8x64xf32>
    %62 = tpu.matmul %52, %61, %cst_61 {dimension_numbers = #tpu.dot_dimension_numbers<[1], [0], [0], [1], [0, 0, 1, 1], [], []>} : vector<8x64xf32>, vector<64x64xf32>, vector<8x64xf32> -> vector<8x64xf32>
    %63 = arith.addf %59, %62 : vector<8x64xf32>
    %c2_62 = arith.constant 2 : index
    %c0_63 = arith.constant 0 : index
    %c0_64 = arith.constant 0 : index
    %64 = vector.load %arg14[%c2_62, %c0_63, %c0_64] : memref<3x64x64xf32, #tpu.memory_space<vmem>>, vector<1x64x64xf32>
    %65 = vector.shape_cast %64 : vector<1x64x64xf32> to vector<64x64xf32>
    %cst_65 = arith.constant dense<0.000000e+00> : vector<8x64xf32>
    %66 = tpu.matmul %56, %65, %cst_65 {dimension_numbers = #tpu.dot_dimension_numbers<[1], [0], [0], [1], [0, 0, 1, 1], [], []>} : vector<8x64xf32>, vector<64x64xf32>, vector<8x64xf32> -> vector<8x64xf32>
    %67 = arith.addf %63, %66 : vector<8x64xf32>
    %c0_66 = arith.constant 0 : index
    %c0_67 = arith.constant 0 : index
    %68 = vector.load %arg15[%c0_66, %c0_67] : memref<1x64xf32, #tpu.memory_space<vmem>>, vector<1x64xf32>
    %69 = vector.broadcast %68 : vector<1x64xf32> to vector<8x64xf32>
    %70 = arith.addf %67, %69 : vector<8x64xf32>
    %71 = arith.addf %43, %70 : vector<8x64xf32>
    %c0_68 = arith.constant 0 : index
    %c0_69 = arith.constant 0 : index
    %72 = vector.load %arg18[%c0_68, %c0_69] : memref<1x64xf32, #tpu.memory_space<vmem>>, vector<1x64xf32>
    %73 = vector.broadcast %72 : vector<1x64xf32> to vector<8x64xf32>
    %74 = arith.mulf %71, %73 : vector<8x64xf32>
    %c0_70 = arith.constant 0 : index
    %c0_71 = arith.constant 0 : index
    %75 = vector.load %arg19[%c0_70, %c0_71] : memref<1x64xf32, #tpu.memory_space<vmem>>, vector<1x64xf32>
    %76 = vector.broadcast %75 : vector<1x64xf32> to vector<8x64xf32>
    %77 = arith.addf %74, %76 : vector<8x64xf32>
    %cst_72 = arith.constant 0.000000e+00 : f32
    %78 = vector.broadcast %cst_72 : f32 to vector<8x64xf32>
    %79 = arith.maximumf %77, %78 : vector<8x64xf32>
    %c0_73 = arith.constant 0 : index
    %c0_74 = arith.constant 0 : index
    %80 = vector.load %arg16[%c0_73, %c0_74] : memref<8x8xf32, #tpu.memory_space<vmem>>, vector<8x8xf32>
    %cst_75 = arith.constant dense<0.000000e+00> : vector<8x64xf32>
    %81 = tpu.matmul %80, %79, %cst_75 {dimension_numbers = #tpu.dot_dimension_numbers<[1], [0], [0], [1], [0, 0, 1, 1], [], []>} : vector<8x8xf32>, vector<8x64xf32>, vector<8x64xf32> -> vector<8x64xf32>
    %c0_76 = arith.constant 0 : index
    %c0_77 = arith.constant 0 : index
    %82 = vector.load %arg17[%c0_76, %c0_77] : memref<8x8xf32, #tpu.memory_space<vmem>>, vector<8x8xf32>
    %cst_78 = arith.constant dense<0.000000e+00> : vector<8x64xf32>
    %83 = tpu.matmul %82, %79, %cst_78 {dimension_numbers = #tpu.dot_dimension_numbers<[1], [0], [0], [1], [0, 0, 1, 1], [], []>} : vector<8x8xf32>, vector<8x64xf32>, vector<8x64xf32> -> vector<8x64xf32>
    %c0_79 = arith.constant 0 : index
    %c0_80 = arith.constant 0 : index
    %c0_81 = arith.constant 0 : index
    %84 = vector.load %arg20[%c0_79, %c0_80, %c0_81] : memref<3x64x64xf32, #tpu.memory_space<vmem>>, vector<1x64x64xf32>
    %85 = vector.shape_cast %84 : vector<1x64x64xf32> to vector<64x64xf32>
    %cst_82 = arith.constant dense<0.000000e+00> : vector<8x64xf32>
    %86 = tpu.matmul %81, %85, %cst_82 {dimension_numbers = #tpu.dot_dimension_numbers<[1], [0], [0], [1], [0, 0, 1, 1], [], []>} : vector<8x64xf32>, vector<64x64xf32>, vector<8x64xf32> -> vector<8x64xf32>
    %c1_83 = arith.constant 1 : index
    %c0_84 = arith.constant 0 : index
    %c0_85 = arith.constant 0 : index
    %87 = vector.load %arg20[%c1_83, %c0_84, %c0_85] : memref<3x64x64xf32, #tpu.memory_space<vmem>>, vector<1x64x64xf32>
    %88 = vector.shape_cast %87 : vector<1x64x64xf32> to vector<64x64xf32>
    %cst_86 = arith.constant dense<0.000000e+00> : vector<8x64xf32>
    %89 = tpu.matmul %79, %88, %cst_86 {dimension_numbers = #tpu.dot_dimension_numbers<[1], [0], [0], [1], [0, 0, 1, 1], [], []>} : vector<8x64xf32>, vector<64x64xf32>, vector<8x64xf32> -> vector<8x64xf32>
    %90 = arith.addf %86, %89 : vector<8x64xf32>
    %c2_87 = arith.constant 2 : index
    %c0_88 = arith.constant 0 : index
    %c0_89 = arith.constant 0 : index
    %91 = vector.load %arg20[%c2_87, %c0_88, %c0_89] : memref<3x64x64xf32, #tpu.memory_space<vmem>>, vector<1x64x64xf32>
    %92 = vector.shape_cast %91 : vector<1x64x64xf32> to vector<64x64xf32>
    %cst_90 = arith.constant dense<0.000000e+00> : vector<8x64xf32>
    %93 = tpu.matmul %83, %92, %cst_90 {dimension_numbers = #tpu.dot_dimension_numbers<[1], [0], [0], [1], [0, 0, 1, 1], [], []>} : vector<8x64xf32>, vector<64x64xf32>, vector<8x64xf32> -> vector<8x64xf32>
    %94 = arith.addf %90, %93 : vector<8x64xf32>
    %c0_91 = arith.constant 0 : index
    %c0_92 = arith.constant 0 : index
    %95 = vector.load %arg21[%c0_91, %c0_92] : memref<1x64xf32, #tpu.memory_space<vmem>>, vector<1x64xf32>
    %96 = vector.broadcast %95 : vector<1x64xf32> to vector<8x64xf32>
    %97 = arith.addf %94, %96 : vector<8x64xf32>
    %98 = arith.mulf %97, %44 : vector<8x64xf32>
    %c0_93 = arith.constant 0 : index
    %c0_94 = arith.constant 0 : index
    %99 = vector.load %arg22[%c0_93, %c0_94] : memref<8x64xf32, #tpu.memory_space<vmem>>, vector<8x64xf32>
    tpu.vector_store %arg22[%c0_93, %c0_94], %98 {strides = array<i32>} : memref<8x64xf32, #tpu.memory_space<vmem>>, vector<8x64xf32>,
    return
  }
  func.func @transform_0(%arg0: i32) -> (i32, i32) {
    %c0_i32 = arith.constant 0 : i32
    %c0_i32_0 = arith.constant 0 : i32
    return %arg0, %c0_i32 : i32, i32
  }
  func.func @transform_1(%arg0: i32) -> (i32, i32) {
    %c0_i32 = arith.constant 0 : i32
    %c0_i32_0 = arith.constant 0 : i32
    return %arg0, %c0_i32 : i32, i32
  }
  func.func @transform_2(%arg0: i32) -> (i32, i32) {
    %c0_i32 = arith.constant 0 : i32
    %c0_i32_0 = arith.constant 0 : i32
    %c0_i32_1 = arith.constant 0 : i32
    return %c0_i32, %c0_i32_0 : i32, i32
  }
  func.func @transform_3(%arg0: i32) -> (i32, i32) {
    %c0_i32 = arith.constant 0 : i32
    %c0_i32_0 = arith.constant 0 : i32
    %c0_i32_1 = arith.constant 0 : i32
    return %c0_i32, %c0_i32_0 : i32, i32
  }
  func.func @transform_4(%arg0: i32) -> (i32, i32, i32) {
    %c0_i32 = arith.constant 0 : i32
    %c0_i32_0 = arith.constant 0 : i32
    %c0_i32_1 = arith.constant 0 : i32
    %c0_i32_2 = arith.constant 0 : i32
    return %c0_i32, %c0_i32_0, %c0_i32_1 : i32, i32, i32
  }
  func.func @transform_5(%arg0: i32) -> (i32, i32, i32) {
    %c0_i32 = arith.constant 0 : i32
    %c0_i32_0 = arith.constant 0 : i32
    %c0_i32_1 = arith.constant 0 : i32
    %c0_i32_2 = arith.constant 0 : i32
    return %c0_i32, %c0_i32_0, %c0_i32_1 : i32, i32, i32
  }
  func.func @transform_6(%arg0: i32) -> (i32, i32) {
    %c0_i32 = arith.constant 0 : i32
    %c0_i32_0 = arith.constant 0 : i32
    %c0_i32_1 = arith.constant 0 : i32
    return %c0_i32, %c0_i32_0 : i32, i32
  }
  func.func @transform_7(%arg0: i32) -> (i32, i32) {
    %c0_i32 = arith.constant 0 : i32
    %c0_i32_0 = arith.constant 0 : i32
    %c0_i32_1 = arith.constant 0 : i32
    return %c0_i32, %c0_i32_0 : i32, i32
  }
  func.func @transform_8(%arg0: i32) -> (i32, i32) {
    %c0_i32 = arith.constant 0 : i32
    %c0_i32_0 = arith.constant 0 : i32
    %c0_i32_1 = arith.constant 0 : i32
    return %c0_i32, %c0_i32_0 : i32, i32
  }
  func.func @transform_9(%arg0: i32) -> (i32, i32) {
    %c0_i32 = arith.constant 0 : i32
    %c0_i32_0 = arith.constant 0 : i32
    %c0_i32_1 = arith.constant 0 : i32
    return %c0_i32, %c0_i32_0 : i32, i32
  }
  func.func @transform_10(%arg0: i32) -> (i32, i32) {
    %c0_i32 = arith.constant 0 : i32
    %c0_i32_0 = arith.constant 0 : i32
    %c0_i32_1 = arith.constant 0 : i32
    return %c0_i32, %c0_i32_0 : i32, i32
  }
  func.func @transform_11(%arg0: i32) -> (i32, i32) {
    %c0_i32 = arith.constant 0 : i32
    %c0_i32_0 = arith.constant 0 : i32
    %c0_i32_1 = arith.constant 0 : i32
    return %c0_i32, %c0_i32_0 : i32, i32
  }
  func.func @transform_12(%arg0: i32) -> (i32, i32) {
    %c0_i32 = arith.constant 0 : i32
    %c0_i32_0 = arith.constant 0 : i32
    %c0_i32_1 = arith.constant 0 : i32
    return %c0_i32, %c0_i32_0 : i32, i32
  }
  func.func @transform_13(%arg0: i32) -> (i32, i32, i32) {
    %c0_i32 = arith.constant 0 : i32
    %c0_i32_0 = arith.constant 0 : i32
    %c0_i32_1 = arith.constant 0 : i32
    %c0_i32_2 = arith.constant 0 : i32
    return %c0_i32, %c0_i32_0, %c0_i32_1 : i32, i32, i32
  }
  func.func @transform_14(%arg0: i32) -> (i32, i32) {
    %c0_i32 = arith.constant 0 : i32
    %c0_i32_0 = arith.constant 0 : i32
    %c0_i32_1 = arith.constant 0 : i32
    return %c0_i32, %c0_i32_0 : i32, i32
  }
  func.func @transform_15(%arg0: i32) -> (i32, i32) {
    %c0_i32 = arith.constant 0 : i32
    %c0_i32_0 = arith.constant 0 : i32
    %c0_i32_1 = arith.constant 0 : i32
    return %c0_i32, %c0_i32_0 : i32, i32
  }
  func.func @transform_16(%arg0: i32) -> (i32, i32) {
    %c0_i32 = arith.constant 0 : i32
    %c0_i32_0 = arith.constant 0 : i32
    %c0_i32_1 = arith.constant 0 : i32
    return %c0_i32, %c0_i32_0 : i32, i32
  }
  func.func @transform_17(%arg0: i32) -> (i32, i32) {
    %c0_i32 = arith.constant 0 : i32
    %c0_i32_0 = arith.constant 0 : i32
    %c0_i32_1 = arith.constant 0 : i32
    return %c0_i32, %c0_i32_0 : i32, i32
  }
  func.func @transform_18(%arg0: i32) -> (i32, i32) {
    %c0_i32 = arith.constant 0 : i32
    %c0_i32_0 = arith.constant 0 : i32
    %c0_i32_1 = arith.constant 0 : i32
    return %c0_i32, %c0_i32_0 : i32, i32
  }
  func.func @transform_19(%arg0: i32) -> (i32, i32, i32) {
    %c0_i32 = arith.constant 0 : i32
    %c0_i32_0 = arith.constant 0 : i32
    %c0_i32_1 = arith.constant 0 : i32
    %c0_i32_2 = arith.constant 0 : i32
    return %c0_i32, %c0_i32_0, %c0_i32_1 : i32, i32, i32
  }
  func.func @transform_20(%arg0: i32) -> (i32, i32) {
    %c0_i32 = arith.constant 0 : i32
    %c0_i32_0 = arith.constant 0 : i32
    %c0_i32_1 = arith.constant 0 : i32
    return %c0_i32, %c0_i32_0 : i32, i32
  }
  func.func @transform_21(%arg0: i32) -> (i32, i32) {
    %c0_i32 = arith.constant 0 : i32
    %c0_i32_0 = arith.constant 0 : i32
    return %arg0, %c0_i32 : i32, i32
  }
}

</mosaic_0001>

<llo_original>
// kernel: tpu_custom_call.1
$region0: #{tpu_custom_call.1}
  #allocation0 [shape = 'u32[]', space=smem, size = 0x4, offset = 0x4, fixed_abs, tag = 'smem constant byte address 0x4 - core index']
  #allocation1 [shape = 'u32[72,128]{1,0:T(1,128)}', space=vmem, size = 0x9000, scoped, tag = 'internal scratch']
  %s0 = inlined_call_operand.hbm [shape: f32[32,64], index: 0, kind: input, shape index: {}]
  %s1 = inlined_call_operand.hbm [shape: f32[16,64], index: 1, kind: input, shape index: {}]
  %s2 = inlined_call_operand.hbm [shape: f32[1,64], index: 2, kind: input, shape index: {}]
  %s3 = inlined_call_operand.hbm [shape: f32[1,64], index: 3, kind: input, shape index: {}]
  %s4 = inlined_call_operand.hbm [shape: f32[3,64,64], index: 4, kind: input, shape index: {}]
  %s5 = inlined_call_operand.hbm [shape: f32[3,64,64], index: 5, kind: input, shape index: {}]
  %s6 = inlined_call_operand.hbm [shape: f32[1,64], index: 6, kind: input, shape index: {}]
  %s7 = inlined_call_operand.hbm [shape: f32[16,16], index: 7, kind: input, shape index: {}]
  %s8 = inlined_call_operand.hbm [shape: f32[16,16], index: 8, kind: input, shape index: {}]
  %s9 = inlined_call_operand.vmem [shape: f32[8,16], index: 9, kind: input, shape index: {}]
  %s10 = inlined_call_operand.hbm [shape: f32[8,16], index: 10, kind: input, shape index: {}]
  %s11 = inlined_call_operand.vmem [shape: f32[1,64], index: 11, kind: input, shape index: {}]
  %s12 = inlined_call_operand.vmem [shape: f32[1,64], index: 12, kind: input, shape index: {}]
  %s13 = inlined_call_operand.hbm [shape: f32[3,64,64], index: 13, kind: input, shape index: {}]
  %s14 = inlined_call_operand.vmem [shape: f32[1,64], index: 14, kind: input, shape index: {}]
  %s15 = inlined_call_operand.hbm [shape: f32[8,8], index: 15, kind: input, shape index: {}]
  %s16 = inlined_call_operand.hbm [shape: f32[8,8], index: 16, kind: input, shape index: {}]
  %s17 = inlined_call_operand.vmem [shape: f32[1,64], index: 17, kind: input, shape index: {}]
  %s18 = inlined_call_operand.vmem [shape: f32[1,64], index: 18, kind: input, shape index: {}]
  %s19 = inlined_call_operand.hbm [shape: f32[3,64,64], index: 19, kind: input, shape index: {}]
  %s20 = inlined_call_operand.vmem [shape: f32[1,64], index: 20, kind: input, shape index: {}]
  %s21 = inlined_call_operand.hbm [shape: f32[16,64], index: 21, kind: output, shape index: {}]
  %s22 = sld [smem:[#allocation0]]
  $region173: #{tpu_custom_call.1} parent=0
    _
  %s24 = ssub.s32 1, %s22
  %s25 = scalar_select 0, %s24, %s22
  $region1: #{tpu_custom_call.1} parent=0
    #allocation2 [shape = 'u8[16384]{0}', space=vmem, size = 0x4000, scoped, tag = 'input window, operand 0']
    #allocation3 [shape = 's32[2]{0}', space=sflag, size = 0x8, scoped, tag = 'scoped memory for tpu_custom_call.1']
    #allocation4 [shape = 's32[2]{0}', space=sflag, size = 0x8, scoped, tag = 'scoped memory for tpu_custom_call.1']
    #allocation5 [shape = 'u8[8192]{0}', space=vmem, size = 0x2000, scoped, tag = 'input window, operand 1']
    #allocation6 [shape = 's32[2]{0}', space=sflag, size = 0x8, scoped, tag = 'scoped memory for tpu_custom_call.1']
    #allocation7 [shape = 'u8[512]{0}', space=vmem, size = 0x400, scoped, tag = 'input window, operand 2, single buffered']
    #allocation8 [shape = 'u8[512]{0}', space=vmem, size = 0x400, scoped, tag = 'input window, operand 3, single buffered']
    #allocation9 [shape = 's32[1]{0}', space=sflag, size = 0x4, scoped, tag = 'scoped memory for tpu_custom_call.1']
    #allocation10 [shape = 'u8[98304]{0}', space=vmem, size = 0x18000, scoped, tag = 'input window, operand 4, single buffered']
    #allocation11 [shape = 'u8[98304]{0}', space=vmem, size = 0x18000, scoped, tag = 'input window, operand 5, single buffered']
    #allocation12 [shape = 's32[1]{0}', space=sflag, size = 0x4, scoped, tag = 'scoped memory for tpu_custom_call.1']
    #allocation13 [shape = 'u8[512]{0}', space=vmem, size = 0x400, scoped, tag = 'input window, operand 6, single buffered']
    #allocation14 [shape = 'u8[8192]{0}', space=vmem, size = 0x2000, scoped, tag = 'input window, operand 7, single buffered']
    #allocation15 [shape = 's32[1]{0}', space=sflag, size = 0x4, scoped, tag = 'scoped memory for tpu_custom_call.1']
    #allocation16 [shape = 'u8[8192]{0}', space=vmem, size = 0x2000, scoped, tag = 'input window, operand 8, single buffered']
    #allocation17 [shape = 'u8[4096]{0}', space=vmem, size = 0x1000, scoped, tag = 'input window, operand 10, single buffered']
    #allocation18 [shape = 's32[1]{0}', space=sflag, size = 0x4, scoped, tag = 'scoped memory for tpu_custom_call.1']
    #allocation19 [shape = 'u8[98304]{0}', space=vmem, size = 0x18000, scoped, tag = 'input window, operand 13, single buffered']
    #allocation20 [shape = 'u8[4096]{0}', space=vmem, size = 0x1000, scoped, tag = 'input window, operand 15, single buffered']
    #allocation21 [shape = 's32[1]{0}', space=sflag, size = 0x4, scoped, tag = 'scoped memory for tpu_custom_call.1']
    #allocation22 [shape = 'u8[4096]{0}', space=vmem, size = 0x1000, scoped, tag = 'input window, operand 16, single buffered']
    #allocation23 [shape = 'u8[98304]{0}', space=vmem, size = 0x18000, scoped, tag = 'input window, operand 19, single buffered']
    #allocation24 [shape = 's32[1]{0}', space=sflag, size = 0x4, scoped, tag = 'scoped memory for tpu_custom_call.1']
    #allocation25 [shape = 'u8[8192]{0}', space=vmem, size = 0x2000, scoped, tag = 'output window, operand 0']
    %26 = vsyncpa [#allocation3], 0
    %s27 = scalar_lea.sflag [#allocation3], 1
    %28 = vsyncpa %s27, 0
    %29 = vsyncpa [#allocation6], 0
    %s30 = scalar_lea.sflag [#allocation6], 1
    %31 = vsyncpa %s30, 0
    %32 = vsyncpa [#allocation9], 0
    %33 = vsyncpa [#allocation12], 0
    %34 = vsyncpa [#allocation15], 0
    %35 = vsyncpa [#allocation18], 0
    %36 = vsyncpa [#allocation21], 0
    %37 = vsyncpa [#allocation24], 0
    %38 = vsyncpa [#allocation4], 0
    %s39 = scalar_lea.sflag [#allocation4], 1
    %40 = vsyncpa %s39, 0
    loop: start=0, step=1, limit=4
    $region2: #{tpu_custom_call.1} parent=1 // loop_pre_header
      _
    $region3: #{tpu_custom_call.1} parent=1 // loop_header
      %s42 = sphi 0, %s46
      %p43 = scmp.ge.s32.totalorder %s42, 4
      %s52 = sphi 0, %s54
      %s55 = sphi 0, %s52
      %s56 = sphi 0, %s55
      %s72 = sphi 0, %s56
      %s78 = sphi 0, %s80
      %s81 = sphi 0, %s78
      %s82 = sphi 0, %s81
      %s98 = sphi 0, %s82
      %s102 = sphi 0, %s102
      %s104 = sphi 0, %s102
      %s105 = sphi 0, %s104
      %s119 = sphi 0, %s105
      %s123 = sphi 0, %s123
      %s125 = sphi 0, %s123
      %s126 = sphi 0, %s125
      %s140 = sphi 0, %s126
      %s144 = sphi 0, %s144
      %s146 = sphi 0, %s144
      %s147 = sphi 0, %s146
      %s161 = sphi 0, %s147
      %s165 = sphi 0, %s165
      %s167 = sphi 0, %s165
      %s168 = sphi 0, %s167
      %s182 = sphi 0, %s168
      %s186 = sphi 0, %s186
      %s188 = sphi 0, %s186
      %s189 = sphi 0, %s188
      %s203 = sphi 0, %s189
      %s207 = sphi 0, %s207
      %s209 = sphi 0, %s207
      %s210 = sphi 0, %s209
      %s224 = sphi 0, %s210
      %s228 = sphi 0, %s228
      %s230 = sphi 0, %s228
      %s231 = sphi 0, %s230
      %s245 = sphi 0, %s231
      %s249 = sphi 0, %s249
      %s251 = sphi 0, %s249
      %s252 = sphi 0, %s251
      %s266 = sphi 0, %s252
      %s270 = sphi 0, %s270
      %s272 = sphi 0, %s270
      %s273 = sphi 0, %s272
      %s287 = sphi 0, %s273
      %s291 = sphi 0, %s291
      %s293 = sphi 0, %s291
      %s294 = sphi 0, %s293
      %s308 = sphi 0, %s294
      %s312 = sphi 0, %s312
      %s314 = sphi 0, %s312
      %s315 = sphi 0, %s314
      %s329 = sphi 0, %s315
      %s333 = sphi 0, %s333
      %s335 = sphi 0, %s333
      %s336 = sphi 0, %s335
      %s350 = sphi 0, %s336
      %s354 = sphi 0, %s354
      %s356 = sphi 0, %s354
      %s357 = sphi 0, %s356
      %s371 = sphi 0, %s357
      %s375 = sphi 0, %s375
      %s377 = sphi 0, %s375
      %s378 = sphi 0, %s377
      %s392 = sphi 0, %s378
      %s396 = sphi 0, %s396
      %s398 = sphi 0, %s396
      %s399 = sphi 0, %s398
      %s413 = sphi 0, %s399
      %s417 = sphi 0, %s417
      %s419 = sphi 0, %s417
      %s420 = sphi 0, %s419
      %s434 = sphi 0, %s420
      %s438 = sphi 0, %s438
      %s440 = sphi 0, %s438
      %s441 = sphi 0, %s440
      %s455 = sphi 0, %s441
      %s459 = sphi 0, %s459
      %s461 = sphi 0, %s459
      %s462 = sphi 0, %s461
      %s476 = sphi 0, %s462
      %s480 = sphi 0, %s480
      %s482 = sphi 0, %s480
      %s483 = sphi 0, %s482
      %s497 = sphi 0, %s483
      %s503 = sphi 0, %s505
      %s506 = sphi 0, %s503
      %s507 = sphi 0, %s506
      %s523 = sphi 0, %s507
    $region4: #{tpu_custom_call.1} parent=1 // loop_header_branch
      %45 = sbr.rel (%p43) target = $region8
    $region5: #{tpu_custom_call.1} parent=1 // loop_body
      %s47 = ssub.s32 %s42, 1
      %s48 = ssub.s32 %s42, 2
      %s49 = sadd.s32 %s42, 1
      %s50 = ssub.s32 %s42, %s49
      %p51 = scmp.eq.s32.totalorder %s50, 0
      %s53 = sadd.s32 %s52, 1
      %s54 = scalar_select %p51, %s52, %s53
      %p57 = pneg %p51
      %p58 = scmp.eq.s32.totalorder %s42, 1
      %p59 = por %p57, %p58
      %p60 = scmp.ne.s32.totalorder %s52, %s55
      %p61 = scmp.eq.s32.totalorder %s42, 0
      %p62 = por %p60, %p61
      %p63 = scmp.ne.s32.totalorder %s52, %s55
      %p64 = scmp.eq.s32.totalorder %s47, 1
      %p65 = por %p63, %p64
      %p66 = scmp.ne.s32.totalorder %s55, %s56
      %p67 = scmp.eq.s32.totalorder %s47, 0
      %p68 = por %p66, %p67
      %p69 = scmp.ne.s32.totalorder %s55, %s56
      %p70 = scmp.eq.s32.totalorder %s48, 1
      %p71 = por %p69, %p70
      %p73 = scmp.ne.s32.totalorder %s56, %s72
      %p74 = scmp.eq.s32.totalorder %s48, 0
      %p75 = por %p73, %p74
      %s76 = ssub.s32 %s42, %s49
      %p77 = scmp.eq.s32.totalorder %s76, 0
      %s79 = sadd.s32 %s78, 1
      %s80 = scalar_select %p77, %s78, %s79
      %p83 = pneg %p77
      %p84 = scmp.eq.s32.totalorder %s42, 1
      %p85 = por %p83, %p84
      %p86 = scmp.ne.s32.totalorder %s78, %s81
      %p87 = scmp.eq.s32.totalorder %s42, 0
      %p88 = por %p86, %p87
      %p89 = scmp.ne.s32.totalorder %s78, %s81
      %p90 = scmp.eq.s32.totalorder %s47, 1
      %p91 = por %p89, %p90
      %p92 = scmp.ne.s32.totalorder %s81, %s82
      %p93 = scmp.eq.s32.totalorder %s47, 0
      %p94 = por %p92, %p93
      %p95 = scmp.ne.s32.totalorder %s81, %s82
      %p96 = scmp.eq.s32.totalorder %s48, 1
      %p97 = por %p95, %p96
      %p99 = scmp.ne.s32.totalorder %s82, %s98
      %p100 = scmp.eq.s32.totalorder %s48, 0
      %p101 = por %p99, %p100
      %s103 = sadd.s32 %s102, 1
      %p106 = scmp.eq.s32.totalorder %s42, 1
      %p107 = scmp.ne.s32.totalorder %s102, %s104
      %p108 = scmp.eq.s32.totalorder %s42, 0
      %p109 = por %p107, %p108
      %p110 = scmp.ne.s32.totalorder %s102, %s104
      %p111 = scmp.eq.s32.totalorder %s47, 1
      %p112 = por %p110, %p111
      %p113 = scmp.ne.s32.totalorder %s104, %s105
      %p114 = scmp.eq.s32.totalorder %s47, 0
      %p115 = por %p113, %p114
      %p116 = scmp.ne.s32.totalorder %s104, %s105
      %p117 = scmp.eq.s32.totalorder %s48, 1
      %p118 = por %p116, %p117
      %p120 = scmp.ne.s32.totalorder %s105, %s119
      %p121 = scmp.eq.s32.totalorder %s48, 0
      %p122 = por %p120, %p121
      %s124 = sadd.s32 %s123, 1
      %p127 = scmp.eq.s32.totalorder %s42, 1
      %p128 = scmp.ne.s32.totalorder %s123, %s125
      %p129 = scmp.eq.s32.totalorder %s42, 0
      %p130 = por %p128, %p129
      %p131 = scmp.ne.s32.totalorder %s123, %s125
      %p132 = scmp.eq.s32.totalorder %s47, 1
      %p133 = por %p131, %p132
      %p134 = scmp.ne.s32.totalorder %s125, %s126
      %p135 = scmp.eq.s32.totalorder %s47, 0
      %p136 = por %p134, %p135
      %p137 = scmp.ne.s32.totalorder %s125, %s126
      %p138 = scmp.eq.s32.totalorder %s48, 1
      %p139 = por %p137, %p138
      %p141 = scmp.ne.s32.totalorder %s126, %s140
      %p142 = scmp.eq.s32.totalorder %s48, 0
      %p143 = por %p141, %p142
      %s145 = sadd.s32 %s144, 1
      %p148 = scmp.eq.s32.totalorder %s42, 1
      %p149 = scmp.ne.s32.totalorder %s144, %s146
      %p150 = scmp.eq.s32.totalorder %s42, 0
      %p151 = por %p149, %p150
      %p152 = scmp.ne.s32.totalorder %s144, %s146
      %p153 = scmp.eq.s32.totalorder %s47, 1
      %p154 = por %p152, %p153
      %p155 = scmp.ne.s32.totalorder %s146, %s147
      %p156 = scmp.eq.s32.totalorder %s47, 0
      %p157 = por %p155, %p156
      %p158 = scmp.ne.s32.totalorder %s146, %s147
      %p159 = scmp.eq.s32.totalorder %s48, 1
      %p160 = por %p158, %p159
      %p162 = scmp.ne.s32.totalorder %s147, %s161
      %p163 = scmp.eq.s32.totalorder %s48, 0
      %p164 = por %p162, %p163
      %s166 = sadd.s32 %s165, 1
      %p169 = scmp.eq.s32.totalorder %s42, 1
      %p170 = scmp.ne.s32.totalorder %s165, %s167
      %p171 = scmp.eq.s32.totalorder %s42, 0
      %p172 = por %p170, %p171
      %p173 = scmp.ne.s32.totalorder %s165, %s167
      %p174 = scmp.eq.s32.totalorder %s47, 1
      %p175 = por %p173, %p174
      %p176 = scmp.ne.s32.totalorder %s167, %s168
      %p177 = scmp.eq.s32.totalorder %s47, 0
      %p178 = por %p176, %p177
      %p179 = scmp.ne.s32.totalorder %s167, %s168
      %p180 = scmp.eq.s32.totalorder %s48, 1
      %p181 = por %p179, %p180
      %p183 = scmp.ne.s32.totalorder %s168, %s182
      %p184 = scmp.eq.s32.totalorder %s48, 0
      %p185 = por %p183, %p184
      %s187 = sadd.s32 %s186, 1
      %p190 = scmp.eq.s32.totalorder %s42, 1
      %p191 = scmp.ne.s32.totalorder %s186, %s188
      %p192 = scmp.eq.s32.totalorder %s42, 0
      %p193 = por %p191, %p192
      %p194 = scmp.ne.s32.totalorder %s186, %s188
      %p195 = scmp.eq.s32.totalorder %s47, 1
      %p196 = por %p194, %p195
      %p197 = scmp.ne.s32.totalorder %s188, %s189
      %p198 = scmp.eq.s32.totalorder %s47, 0
      %p199 = por %p197, %p198
      %p200 = scmp.ne.s32.totalorder %s188, %s189
      %p201 = scmp.eq.s32.totalorder %s48, 1
      %p202 = por %p200, %p201
      %p204 = scmp.ne.s32.totalorder %s189, %s203
      %p205 = scmp.eq.s32.totalorder %s48, 0
      %p206 = por %p204, %p205
      %s208 = sadd.s32 %s207, 1
      %p211 = scmp.eq.s32.totalorder %s42, 1
      %p212 = scmp.ne.s32.totalorder %s207, %s209
      %p213 = scmp.eq.s32.totalorder %s42, 0
      %p214 = por %p212, %p213
      %p215 = scmp.ne.s32.totalorder %s207, %s209
      %p216 = scmp.eq.s32.totalorder %s47, 1
      %p217 = por %p215, %p216
      %p218 = scmp.ne.s32.totalorder %s209, %s210
      %p219 = scmp.eq.s32.totalorder %s47, 0
      %p220 = por %p218, %p219
      %p221 = scmp.ne.s32.totalorder %s209, %s210
      %p222 = scmp.eq.s32.totalorder %s48, 1
      %p223 = por %p221, %p222
      %p225 = scmp.ne.s32.totalorder %s210, %s224
      %p226 = scmp.eq.s32.totalorder %s48, 0
      %p227 = por %p225, %p226
      %s229 = sadd.s32 %s228, 1
      %p232 = scmp.eq.s32.totalorder %s42, 1
      %p233 = scmp.ne.s32.totalorder %s228, %s230
      %p234 = scmp.eq.s32.totalorder %s42, 0
      %p235 = por %p233, %p234
      %p236 = scmp.ne.s32.totalorder %s228, %s230
      %p237 = scmp.eq.s32.totalorder %s47, 1
      %p238 = por %p236, %p237
      %p239 = scmp.ne.s32.totalorder %s230, %s231
      %p240 = scmp.eq.s32.totalorder %s47, 0
      %p241 = por %p239, %p240
      %p242 = scmp.ne.s32.totalorder %s230, %s231
      %p243 = scmp.eq.s32.totalorder %s48, 1
      %p244 = por %p242, %p243
      %p246 = scmp.ne.s32.totalorder %s231, %s245
      %p247 = scmp.eq.s32.totalorder %s48, 0
      %p248 = por %p246, %p247
      %s250 = sadd.s32 %s249, 1
      %p253 = scmp.eq.s32.totalorder %s42, 1
      %p254 = scmp.ne.s32.totalorder %s249, %s251
      %p255 = scmp.eq.s32.totalorder %s42, 0
      %p256 = por %p254, %p255
      %p257 = scmp.ne.s32.totalorder %s249, %s251
      %p258 = scmp.eq.s32.totalorder %s47, 1
      %p259 = por %p257, %p258
      %p260 = scmp.ne.s32.totalorder %s251, %s252
      %p261 = scmp.eq.s32.totalorder %s47, 0
      %p262 = por %p260, %p261
      %p263 = scmp.ne.s32.totalorder %s251, %s252
      %p264 = scmp.eq.s32.totalorder %s48, 1
      %p265 = por %p263, %p264
      %p267 = scmp.ne.s32.totalorder %s252, %s266
      %p268 = scmp.eq.s32.totalorder %s48, 0
      %p269 = por %p267, %p268
      %s271 = sadd.s32 %s270, 1
      %p274 = scmp.eq.s32.totalorder %s42, 1
      %p275 = scmp.ne.s32.totalorder %s270, %s272
      %p276 = scmp.eq.s32.totalorder %s42, 0
      %p277 = por %p275, %p276
      %p278 = scmp.ne.s32.totalorder %s270, %s272
      %p279 = scmp.eq.s32.totalorder %s47, 1
      %p280 = por %p278, %p279
      %p281 = scmp.ne.s32.totalorder %s272, %s273
      %p282 = scmp.eq.s32.totalorder %s47, 0
      %p283 = por %p281, %p282
      %p284 = scmp.ne.s32.totalorder %s272, %s273
      %p285 = scmp.eq.s32.totalorder %s48, 1
      %p286 = por %p284, %p285
      %p288 = scmp.ne.s32.totalorder %s273, %s287
      %p289 = scmp.eq.s32.totalorder %s48, 0
      %p290 = por %p288, %p289
      %s292 = sadd.s32 %s291, 1
      %p295 = scmp.eq.s32.totalorder %s42, 1
      %p296 = scmp.ne.s32.totalorder %s291, %s293
      %p297 = scmp.eq.s32.totalorder %s42, 0
      %p298 = por %p296, %p297
      %p299 = scmp.ne.s32.totalorder %s291, %s293
      %p300 = scmp.eq.s32.totalorder %s47, 1
      %p301 = por %p299, %p300
      %p302 = scmp.ne.s32.totalorder %s293, %s294
      %p303 = scmp.eq.s32.totalorder %s47, 0
      %p304 = por %p302, %p303
      %p305 = scmp.ne.s32.totalorder %s293, %s294
      %p306 = scmp.eq.s32.totalorder %s48, 1
      %p307 = por %p305, %p306
      %p309 = scmp.ne.s32.totalorder %s294, %s308
      %p310 = scmp.eq.s32.totalorder %s48, 0
      %p311 = por %p309, %p310
      %s313 = sadd.s32 %s312, 1
      %p316 = scmp.eq.s32.totalorder %s42, 1
      %p317 = scmp.ne.s32.totalorder %s312, %s314
      %p318 = scmp.eq.s32.totalorder %s42, 0
      %p319 = por %p317, %p318
      %p320 = scmp.ne.s32.totalorder %s312, %s314
      %p321 = scmp.eq.s32.totalorder %s47, 1
      %p322 = por %p320, %p321
      %p323 = scmp.ne.s32.totalorder %s314, %s315
      %p324 = scmp.eq.s32.totalorder %s47, 0
      %p325 = por %p323, %p324
      %p326 = scmp.ne.s32.totalorder %s314, %s315
      %p327 = scmp.eq.s32.totalorder %s48, 1
      %p328 = por %p326, %p327
      %p330 = scmp.ne.s32.totalorder %s315, %s329
      %p331 = scmp.eq.s32.totalorder %s48, 0
      %p332 = por %p330, %p331
      %s334 = sadd.s32 %s333, 1
      %p337 = scmp.eq.s32.totalorder %s42, 1
      %p338 = scmp.ne.s32.totalorder %s333, %s335
      %p339 = scmp.eq.s32.totalorder %s42, 0
      %p340 = por %p338, %p339
      %p341 = scmp.ne.s32.totalorder %s333, %s335
      %p342 = scmp.eq.s32.totalorder %s47, 1
      %p343 = por %p341, %p342
      %p344 = scmp.ne.s32.totalorder %s335, %s336
      %p345 = scmp.eq.s32.totalorder %s47, 0
      %p346 = por %p344, %p345
      %p347 = scmp.ne.s32.totalorder %s335, %s336
      %p348 = scmp.eq.s32.totalorder %s48, 1
      %p349 = por %p347, %p348
      %p351 = scmp.ne.s32.totalorder %s336, %s350
      %p352 = scmp.eq.s32.totalorder %s48, 0
      %p353 = por %p351, %p352
      %s355 = sadd.s32 %s354, 1
      %p358 = scmp.eq.s32.totalorder %s42, 1
      %p359 = scmp.ne.s32.totalorder %s354, %s356
      %p360 = scmp.eq.s32.totalorder %s42, 0
      %p361 = por %p359, %p360
      %p362 = scmp.ne.s32.totalorder %s354, %s356
      %p363 = scmp.eq.s32.totalorder %s47, 1
      %p364 = por %p362, %p363
      %p365 = scmp.ne.s32.totalorder %s356, %s357
      %p366 = scmp.eq.s32.totalorder %s47, 0
      %p367 = por %p365, %p366
      %p368 = scmp.ne.s32.totalorder %s356, %s357
      %p369 = scmp.eq.s32.totalorder %s48, 1
      %p370 = por %p368, %p369
      %p372 = scmp.ne.s32.totalorder %s357, %s371
      %p373 = scmp.eq.s32.totalorder %s48, 0
      %p374 = por %p372, %p373
      %s376 = sadd.s32 %s375, 1
      %p379 = scmp.eq.s32.totalorder %s42, 1
      %p380 = scmp.ne.s32.totalorder %s375, %s377
      %p381 = scmp.eq.s32.totalorder %s42, 0
      %p382 = por %p380, %p381
      %p383 = scmp.ne.s32.totalorder %s375, %s377
      %p384 = scmp.eq.s32.totalorder %s47, 1
      %p385 = por %p383, %p384
      %p386 = scmp.ne.s32.totalorder %s377, %s378
      %p387 = scmp.eq.s32.totalorder %s47, 0
      %p388 = por %p386, %p387
      %p389 = scmp.ne.s32.totalorder %s377, %s378
      %p390 = scmp.eq.s32.totalorder %s48, 1
      %p391 = por %p389, %p390
      %p393 = scmp.ne.s32.totalorder %s378, %s392
      %p394 = scmp.eq.s32.totalorder %s48, 0
      %p395 = por %p393, %p394
      %s397 = sadd.s32 %s396, 1
      %p400 = scmp.eq.s32.totalorder %s42, 1
      %p401 = scmp.ne.s32.totalorder %s396, %s398
      %p402 = scmp.eq.s32.totalorder %s42, 0
      %p403 = por %p401, %p402
      %p404 = scmp.ne.s32.totalorder %s396, %s398
      %p405 = scmp.eq.s32.totalorder %s47, 1
      %p406 = por %p404, %p405
      %p407 = scmp.ne.s32.totalorder %s398, %s399
      %p408 = scmp.eq.s32.totalorder %s47, 0
      %p409 = por %p407, %p408
      %p410 = scmp.ne.s32.totalorder %s398, %s399
      %p411 = scmp.eq.s32.totalorder %s48, 1
      %p412 = por %p410, %p411
      %p414 = scmp.ne.s32.totalorder %s399, %s413
      %p415 = scmp.eq.s32.totalorder %s48, 0
      %p416 = por %p414, %p415
      %s418 = sadd.s32 %s417, 1
      %p421 = scmp.eq.s32.totalorder %s42, 1
      %p422 = scmp.ne.s32.totalorder %s417, %s419
      %p423 = scmp.eq.s32.totalorder %s42, 0
      %p424 = por %p422, %p423
      %p425 = scmp.ne.s32.totalorder %s417, %s419
      %p426 = scmp.eq.s32.totalorder %s47, 1
      %p427 = por %p425, %p426
      %p428 = scmp.ne.s32.totalorder %s419, %s420
      %p429 = scmp.eq.s32.totalorder %s47, 0
      %p430 = por %p428, %p429
      %p431 = scmp.ne.s32.totalorder %s419, %s420
      %p432 = scmp.eq.s32.totalorder %s48, 1
      %p433 = por %p431, %p432
      %p435 = scmp.ne.s32.totalorder %s420, %s434
      %p436 = scmp.eq.s32.totalorder %s48, 0
      %p437 = por %p435, %p436
      %s439 = sadd.s32 %s438, 1
      %p442 = scmp.eq.s32.totalorder %s42, 1
      %p443 = scmp.ne.s32.totalorder %s438, %s440
      %p444 = scmp.eq.s32.totalorder %s42, 0
      %p445 = por %p443, %p444
      %p446 = scmp.ne.s32.totalorder %s438, %s440
      %p447 = scmp.eq.s32.totalorder %s47, 1
      %p448 = por %p446, %p447
      %p449 = scmp.ne.s32.totalorder %s440, %s441
      %p450 = scmp.eq.s32.totalorder %s47, 0
      %p451 = por %p449, %p450
      %p452 = scmp.ne.s32.totalorder %s440, %s441
      %p453 = scmp.eq.s32.totalorder %s48, 1
      %p454 = por %p452, %p453
      %p456 = scmp.ne.s32.totalorder %s441, %s455
      %p457 = scmp.eq.s32.totalorder %s48, 0
      %p458 = por %p456, %p457
      %s460 = sadd.s32 %s459, 1
      %p463 = scmp.eq.s32.totalorder %s42, 1
      %p464 = scmp.ne.s32.totalorder %s459, %s461
      %p465 = scmp.eq.s32.totalorder %s42, 0
      %p466 = por %p464, %p465
      %p467 = scmp.ne.s32.totalorder %s459, %s461
      %p468 = scmp.eq.s32.totalorder %s47, 1
      %p469 = por %p467, %p468
      %p470 = scmp.ne.s32.totalorder %s461, %s462
      %p471 = scmp.eq.s32.totalorder %s47, 0
      %p472 = por %p470, %p471
      %p473 = scmp.ne.s32.totalorder %s461, %s462
      %p474 = scmp.eq.s32.totalorder %s48, 1
      %p475 = por %p473, %p474
      %p477 = scmp.ne.s32.totalorder %s462, %s476
      %p478 = scmp.eq.s32.totalorder %s48, 0
      %p479 = por %p477, %p478
      %s481 = sadd.s32 %s480, 1
      %p484 = scmp.eq.s32.totalorder %s42, 1
      %p485 = scmp.ne.s32.totalorder %s480, %s482
      %p486 = scmp.eq.s32.totalorder %s42, 0
      %p487 = por %p485, %p486
      %p488 = scmp.ne.s32.totalorder %s480, %s482
      %p489 = scmp.eq.s32.totalorder %s47, 1
      %p490 = por %p488, %p489
      %p491 = scmp.ne.s32.totalorder %s482, %s483
      %p492 = scmp.eq.s32.totalorder %s47, 0
      %p493 = por %p491, %p492
      %p494 = scmp.ne.s32.totalorder %s482, %s483
      %p495 = scmp.eq.s32.totalorder %s48, 1
      %p496 = por %p494, %p495
      %p498 = scmp.ne.s32.totalorder %s483, %s497
      %p499 = scmp.eq.s32.totalorder %s48, 0
      %p500 = por %p498, %p499
      %s501 = ssub.s32 %s42, %s49
      %p502 = scmp.eq.s32.totalorder %s501, 0
      %s504 = sadd.s32 %s503, 1
      %s505 = scalar_select %p502, %s503, %s504
      %p508 = pneg %p502
      %p509 = scmp.eq.s32.totalorder %s42, 1
      %p510 = por %p508, %p509
      %p511 = scmp.ne.s32.totalorder %s503, %s506
      %p512 = scmp.eq.s32.totalorder %s42, 0
      %p513 = por %p511, %p512
      %p514 = scmp.ne.s32.totalorder %s503, %s506
      %p515 = scmp.eq.s32.totalorder %s47, 1
      %p516 = por %p514, %p515
      %p517 = scmp.ne.s32.totalorder %s506, %s507
      %p518 = scmp.eq.s32.totalorder %s47, 0
      %p519 = por %p517, %p518
      %p520 = scmp.ne.s32.totalorder %s506, %s507
      %p521 = scmp.eq.s32.totalorder %s48, 1
      %p522 = por %p520, %p521
      %p524 = scmp.ne.s32.totalorder %s507, %s523
      %p525 = scmp.eq.s32.totalorder %s48, 0
      %p526 = por %p524, %p525
      %p527 = scmp.le.s32.totalorder 1, %s42
      %p528 = scmp.lt.s32.totalorder %s42, 3
      %p529 = pnand %p527, %p528
      %p530 = pneg %p529
      // Predicated region
      $region9: #{tpu_custom_call.1} parent=5 // pred_check
        _
      $region10: #{tpu_custom_call.1} parent=5 // pred_check_branch
        %532 = sbr.rel (%p529) target = $region12
      $region11: #{tpu_custom_call.1} parent=5 // pred_region
        %s533 = ssub.s32 %s42, 1
        // Predicated region
        $region13: #{tpu_custom_call.1} parent=11 // pred_check
          %p534 = pneg %p115
        $region14: #{tpu_custom_call.1} parent=11 // pred_check_branch
          %536 = sbr.rel (%p534) target = $region16
        $region15: #{tpu_custom_call.1} parent=11 // pred_region
          %538 = vsyncadd [#allocation6], 0
          %s540 = sshll.u32 %s2, 4
          %s541 = int_to_ptr.hbm [resolvable:$true] %s540
          %s542 = sshll.u32 [#allocation7], 4
          %s543 = int_to_ptr.vmem [resolvable:$true] %s542
          %545 = dma.hbm_to_vmem [thread:$0]  %s541, 16, %s543, [#allocation6]
        $region16: #{tpu_custom_call.1} parent=11 // pred_fallthru
          _
        // Predicated region
        $region17: #{tpu_custom_call.1} parent=11 // pred_check
          %p546 = pneg %p136
        $region18: #{tpu_custom_call.1} parent=11 // pred_check_branch
          %548 = sbr.rel (%p546) target = $region20
        $region19: #{tpu_custom_call.1} parent=11 // pred_region
          %550 = vsyncadd [#allocation9], 0
          %s552 = sshll.u32 %s3, 4
          %s553 = int_to_ptr.hbm [resolvable:$true] %s552
          %s554 = sshll.u32 [#allocation8], 4
          %s555 = int_to_ptr.vmem [resolvable:$true] %s554
          %557 = dma.hbm_to_vmem [thread:$0]  %s553, 16, %s555, [#allocation9]
        $region20: #{tpu_custom_call.1} parent=11 // pred_fallthru
          _
        // Predicated region
        $region21: #{tpu_custom_call.1} parent=11 // pred_check
          %p558 = pneg %p157
        $region22: #{tpu_custom_call.1} parent=11 // pred_check_branch
          %560 = sbr.rel (%p558) target = $region24
        $region23: #{tpu_custom_call.1} parent=11 // pred_region
          %562 = vsyncadd [#allocation9], 0
          %s563 = sshll.u32 %s4, 4
          %s564 = int_to_ptr.hbm [resolvable:$true] %s563
          %s565 = sshll.u32 [#allocation10], 4
          %s566 = int_to_ptr.vmem [resolvable:$true] %s565
          %571 = dma.hbm_to_vmem [thread:$0]  %s564, 3072, %s566, [#allocation9], 128, 128, 8
        $region24: #{tpu_custom_call.1} parent=11 // pred_fallthru
          _
        // Predicated region
        $region25: #{tpu_custom_call.1} parent=11 // pred_check
          %p572 = pneg %p178
        $region26: #{tpu_custom_call.1} parent=11 // pred_check_branch
          %574 = sbr.rel (%p572) target = $region28
        $region27: #{tpu_custom_call.1} parent=11 // pred_region
          %576 = vsyncadd [#allocation12], 0
          %s577 = sshll.u32 %s5, 4
          %s578 = int_to_ptr.hbm [resolvable:$true] %s577
          %s579 = sshll.u32 [#allocation11], 4
          %s580 = int_to_ptr.vmem [resolvable:$true] %s579
          %585 = dma.hbm_to_vmem [thread:$0]  %s578, 3072, %s580, [#allocation12], 128, 128, 8
        $region28: #{tpu_custom_call.1} parent=11 // pred_fallthru
          _
        // Predicated region
        $region29: #{tpu_custom_call.1} parent=11 // pred_check
          %p586 = pneg %p199
        $region30: #{tpu_custom_call.1} parent=11 // pred_check_branch
          %588 = sbr.rel (%p586) target = $region32
        $region31: #{tpu_custom_call.1} parent=11 // pred_region
          %590 = vsyncadd [#allocation12], 0
          %s592 = sshll.u32 %s6, 4
          %s593 = int_to_ptr.hbm [resolvable:$true] %s592
          %s594 = sshll.u32 [#allocation13], 4
          %s595 = int_to_ptr.vmem [resolvable:$true] %s594
          %597 = dma.hbm_to_vmem [thread:$0]  %s593, 16, %s595, [#allocation12]
        $region32: #{tpu_custom_call.1} parent=11 // pred_fallthru
          _
        // Predicated region
        $region33: #{tpu_custom_call.1} parent=11 // pred_check
          %p598 = pneg %p220
        $region34: #{tpu_custom_call.1} parent=11 // pred_check_branch
          %600 = sbr.rel (%p598) target = $region36
        $region35: #{tpu_custom_call.1} parent=11 // pred_region
          %602 = vsyncadd [#allocation15], 0
          %s603 = sshll.u32 %s7, 4
          %s604 = int_to_ptr.hbm [resolvable:$true] %s603
          %s605 = sshll.u32 [#allocation14], 4
          %s606 = int_to_ptr.vmem [resolvable:$true] %s605
          %611 = dma.hbm_to_vmem [thread:$0]  %s604, 256, %s606, [#allocation15], 128, 128, 8
        $region36: #{tpu_custom_call.1} parent=11 // pred_fallthru
          _
        // Predicated region
        $region37: #{tpu_custom_call.1} parent=11 // pred_check
          %p612 = pneg %p241
        $region38: #{tpu_custom_call.1} parent=11 // pred_check_branch
          %614 = sbr.rel (%p612) target = $region40
        $region39: #{tpu_custom_call.1} parent=11 // pred_region
          %616 = vsyncadd [#allocation15], 0
          %s617 = sshll.u32 %s8, 4
          %s618 = int_to_ptr.hbm [resolvable:$true] %s617
          %s619 = sshll.u32 [#allocation16], 4
          %s620 = int_to_ptr.vmem [resolvable:$true] %s619
          %625 = dma.hbm_to_vmem [thread:$0]  %s618, 256, %s620, [#allocation15], 128, 128, 8
        $region40: #{tpu_custom_call.1} parent=11 // pred_fallthru
          _
        // Predicated region
        $region41: #{tpu_custom_call.1} parent=11 // pred_check
          %p626 = pneg %p262
        $region42: #{tpu_custom_call.1} parent=11 // pred_check_branch
          %628 = sbr.rel (%p626) target = $region44
        $region43: #{tpu_custom_call.1} parent=11 // pred_region
          _
        $region44: #{tpu_custom_call.1} parent=11 // pred_fallthru
          _
        // Predicated region
        $region45: #{tpu_custom_call.1} parent=11 // pred_check
          %p629 = pneg %p283
        $region46: #{tpu_custom_call.1} parent=11 // pred_check_branch
          %631 = sbr.rel (%p629) target = $region48
        $region47: #{tpu_custom_call.1} parent=11 // pred_region
          %633 = vsyncadd [#allocation18], 0
          %s635 = sshll.u32 %s10, 4
          %s636 = int_to_ptr.hbm [resolvable:$true] %s635
          %s637 = sshll.u32 [#allocation17], 4
          %s638 = int_to_ptr.vmem [resolvable:$true] %s637
          %640 = dma.hbm_to_vmem [thread:$0]  %s636, 128, %s638, [#allocation18]
        $region48: #{tpu_custom_call.1} parent=11 // pred_fallthru
          _
        // Predicated region
        $region49: #{tpu_custom_call.1} parent=11 // pred_check
          %p641 = pneg %p304
        $region50: #{tpu_custom_call.1} parent=11 // pred_check_branch
          %643 = sbr.rel (%p641) target = $region52
        $region51: #{tpu_custom_call.1} parent=11 // pred_region
          _
        $region52: #{tpu_custom_call.1} parent=11 // pred_fallthru
          _
        // Predicated region
        $region53: #{tpu_custom_call.1} parent=11 // pred_check
          %p644 = pneg %p325
        $region54: #{tpu_custom_call.1} parent=11 // pred_check_branch
          %646 = sbr.rel (%p644) target = $region56
        $region55: #{tpu_custom_call.1} parent=11 // pred_region
          _
        $region56: #{tpu_custom_call.1} parent=11 // pred_fallthru
          _
        // Predicated region
        $region57: #{tpu_custom_call.1} parent=11 // pred_check
          %p647 = pneg %p346
        $region58: #{tpu_custom_call.1} parent=11 // pred_check_branch
          %649 = sbr.rel (%p647) target = $region60
        $region59: #{tpu_custom_call.1} parent=11 // pred_region
          %651 = vsyncadd [#allocation18], 0
          %s652 = sshll.u32 %s13, 4
          %s653 = int_to_ptr.hbm [resolvable:$true] %s652
          %s654 = sshll.u32 [#allocation19], 4
          %s655 = int_to_ptr.vmem [resolvable:$true] %s654
          %660 = dma.hbm_to_vmem [thread:$0]  %s653, 3072, %s655, [#allocation18], 128, 128, 8
        $region60: #{tpu_custom_call.1} parent=11 // pred_fallthru
          _
        // Predicated region
        $region61: #{tpu_custom_call.1} parent=11 // pred_check
          %p661 = pneg %p367
        $region62: #{tpu_custom_call.1} parent=11 // pred_check_branch
          %663 = sbr.rel (%p661) target = $region64
        $region63: #{tpu_custom_call.1} parent=11 // pred_region
          _
        $region64: #{tpu_custom_call.1} parent=11 // pred_fallthru
          _
        // Predicated region
        $region65: #{tpu_custom_call.1} parent=11 // pred_check
          %p664 = pneg %p388
        $region66: #{tpu_custom_call.1} parent=11 // pred_check_branch
          %666 = sbr.rel (%p664) target = $region68
        $region67: #{tpu_custom_call.1} parent=11 // pred_region
          %668 = vsyncadd [#allocation21], 0
          %s670 = sshll.u32 %s15, 4
          %s671 = int_to_ptr.hbm [resolvable:$true] %s670
          %s672 = sshll.u32 [#allocation20], 4
          %s673 = int_to_ptr.vmem [resolvable:$true] %s672
          %675 = dma.hbm_to_vmem [thread:$0]  %s671, 128, %s673, [#allocation21]
        $region68: #{tpu_custom_call.1} parent=11 // pred_fallthru
          _
        // Predicated region
        $region69: #{tpu_custom_call.1} parent=11 // pred_check
          %p676 = pneg %p409
        $region70: #{tpu_custom_call.1} parent=11 // pred_check_branch
          %678 = sbr.rel (%p676) target = $region72
        $region71: #{tpu_custom_call.1} parent=11 // pred_region
          %680 = vsyncadd [#allocation21], 0
          %s682 = sshll.u32 %s16, 4
          %s683 = int_to_ptr.hbm [resolvable:$true] %s682
          %s684 = sshll.u32 [#allocation22], 4
          %s685 = int_to_ptr.vmem [resolvable:$true] %s684
          %687 = dma.hbm_to_vmem [thread:$0]  %s683, 128, %s685, [#allocation21]
        $region72: #{tpu_custom_call.1} parent=11 // pred_fallthru
          _
        // Predicated region
        $region73: #{tpu_custom_call.1} parent=11 // pred_check
          %p688 = pneg %p430
        $region74: #{tpu_custom_call.1} parent=11 // pred_check_branch
          %690 = sbr.rel (%p688) target = $region76
        $region75: #{tpu_custom_call.1} parent=11 // pred_region
          _
        $region76: #{tpu_custom_call.1} parent=11 // pred_fallthru
          _
        // Predicated region
        $region77: #{tpu_custom_call.1} parent=11 // pred_check
          %p691 = pneg %p451
        $region78: #{tpu_custom_call.1} parent=11 // pred_check_branch
          %693 = sbr.rel (%p691) target = $region80
        $region79: #{tpu_custom_call.1} parent=11 // pred_region
          _
        $region80: #{tpu_custom_call.1} parent=11 // pred_fallthru
          _
        // Predicated region
        $region81: #{tpu_custom_call.1} parent=11 // pred_check
          %p694 = pneg %p472
        $region82: #{tpu_custom_call.1} parent=11 // pred_check_branch
          %696 = sbr.rel (%p694) target = $region84
        $region83: #{tpu_custom_call.1} parent=11 // pred_region
          %698 = vsyncadd [#allocation24], 0
          %s699 = sshll.u32 %s19, 4
          %s700 = int_to_ptr.hbm [resolvable:$true] %s699
          %s701 = sshll.u32 [#allocation23], 4
          %s702 = int_to_ptr.vmem [resolvable:$true] %s701
          %707 = dma.hbm_to_vmem [thread:$0]  %s700, 3072, %s702, [#allocation24], 128, 128, 8
        $region84: #{tpu_custom_call.1} parent=11 // pred_fallthru
          _
        // Predicated region
        $region85: #{tpu_custom_call.1} parent=11 // pred_check
          %p708 = pneg %p493
        $region86: #{tpu_custom_call.1} parent=11 // pred_check_branch
          %710 = sbr.rel (%p708) target = $region88
        $region87: #{tpu_custom_call.1} parent=11 // pred_region
          _
        $region88: #{tpu_custom_call.1} parent=11 // pred_fallthru
          _
      $region12: #{tpu_custom_call.1} parent=5 // pred_fallthru
        _
      %p711 = scmp.lt.s32.totalorder %s42, 2
      // Predicated region
      $region89: #{tpu_custom_call.1} parent=5 // pred_check
        %p712 = pneg %p711
      $region90: #{tpu_custom_call.1} parent=5 // pred_check_branch
        %714 = sbr.rel (%p712) target = $region92
      $region91: #{tpu_custom_call.1} parent=5 // pred_region
        // Predicated region
        $region93: #{tpu_custom_call.1} parent=91 // pred_check
          %p715 = pneg %p62
        $region94: #{tpu_custom_call.1} parent=91 // pred_check_branch
          %717 = sbr.rel (%p715) target = $region96
        $region95: #{tpu_custom_call.1} parent=91 // pred_region
          %s718 = sand.u32 %s52, 1
          %s719 = scalar_lea.sflag [#allocation3], %s718
          %s720 = sand.u32 %s52, 1
          %s721 = smul.addr %s720, 16
          %s722 = scalar_lea.vmem [#allocation2], %s721
          %s723 = smul.u32 2, %s42
          %725 = vsyncadd %s719, 0
          %s726 = smul.addr %s723, 8
          %s727 = scalar_lea.hbm %s0, %s726
          %s728 = sshll.u32 %s727, 4
          %s729 = int_to_ptr.hbm [resolvable:$true] %s728
          %s730 = sshll.u32 %s722, 4
          %s731 = int_to_ptr.vmem [resolvable:$true] %s730
          %736 = dma.hbm_to_vmem [thread:$0]  %s729, 256, %s731, %s719, 128, 128, 8
        $region96: #{tpu_custom_call.1} parent=91 // pred_fallthru
          _
        // Predicated region
        $region97: #{tpu_custom_call.1} parent=91 // pred_check
          %p737 = pneg %p88
        $region98: #{tpu_custom_call.1} parent=91 // pred_check_branch
          %739 = sbr.rel (%p737) target = $region100
        $region99: #{tpu_custom_call.1} parent=91 // pred_region
          %s740 = sand.u32 %s42, 1
          %s741 = scalar_lea.sflag [#allocation6], %s740
          %s742 = sand.u32 %s78, 1
          %s743 = smul.addr %s742, 8
          %s744 = scalar_lea.vmem [#allocation5], %s743
          %746 = vsyncadd %s741, 0
          %s747 = smul.addr %s42, 8
          %s748 = scalar_lea.hbm %s1, %s747
          %s750 = sshll.u32 %s748, 4
          %s751 = int_to_ptr.hbm [resolvable:$true] %s750
          %s752 = sshll.u32 %s744, 4
          %s753 = int_to_ptr.vmem [resolvable:$true] %s752
          %755 = dma.hbm_to_vmem [thread:$0]  %s751, 128, %s753, %s741
        $region100: #{tpu_custom_call.1} parent=91 // pred_fallthru
          _
      $region92: #{tpu_custom_call.1} parent=5 // pred_fallthru
        _
      %p756 = scmp.le.s32.totalorder 1, %s42
      %p757 = scmp.lt.s32.totalorder %s42, 3
      %p758 = pnand %p756, %p757
      %p759 = pneg %p758
      // Predicated region
      $region101: #{tpu_custom_call.1} parent=5 // pred_check
        _
      $region102: #{tpu_custom_call.1} parent=5 // pred_check_branch
        %761 = sbr.rel (%p758) target = $region104
      $region103: #{tpu_custom_call.1} parent=5 // pred_region
        %s762 = ssub.s32 %s42, 1
        %s763 = sand.u32 %s55, 1
        %s764 = scalar_lea.sflag [#allocation3], %s763
        %s765 = sand.u32 %s55, 1
        %s766 = smul.addr %s765, 16
        %s767 = scalar_lea.vmem [#allocation2], %s766
        // Predicated region
        $region105: #{tpu_custom_call.1} parent=103 // pred_check
          %p768 = pneg %p68
        $region106: #{tpu_custom_call.1} parent=103 // pred_check_branch
          %770 = sbr.rel (%p768) target = $region108
        $region107: #{tpu_custom_call.1} parent=103 // pred_region
          %772 = dma.done %s764, 256
        $region108: #{tpu_custom_call.1} parent=103 // pred_fallthru
          _
        %s773 = sand.u32 %s47, 1
        %s774 = scalar_lea.sflag [#allocation6], %s773
        %s775 = sand.u32 %s81, 1
        %s776 = smul.addr %s775, 8
        %s777 = scalar_lea.vmem [#allocation5], %s776
        // Predicated region
        $region109: #{tpu_custom_call.1} parent=103 // pred_check
          %p778 = pneg %p94
        $region110: #{tpu_custom_call.1} parent=103 // pred_check_branch
          %780 = sbr.rel (%p778) target = $region112
        $region111: #{tpu_custom_call.1} parent=103 // pred_region
          %782 = dma.done %s774, 128
        $region112: #{tpu_custom_call.1} parent=103 // pred_fallthru
          _
        // Predicated region
        $region113: #{tpu_custom_call.1} parent=103 // pred_check
          %p783 = pneg %p115
        $region114: #{tpu_custom_call.1} parent=103 // pred_check_branch
          %785 = sbr.rel (%p783) target = $region116
        $region115: #{tpu_custom_call.1} parent=103 // pred_region
          %787 = dma.done [#allocation6], 16
        $region116: #{tpu_custom_call.1} parent=103 // pred_fallthru
          _
        // Predicated region
        $region117: #{tpu_custom_call.1} parent=103 // pred_check
          %p788 = pneg %p136
        $region118: #{tpu_custom_call.1} parent=103 // pred_check_branch
          %790 = sbr.rel (%p788) target = $region120
        $region119: #{tpu_custom_call.1} parent=103 // pred_region
          %792 = dma.done [#allocation9], 16
        $region120: #{tpu_custom_call.1} parent=103 // pred_fallthru
          _
        // Predicated region
        $region121: #{tpu_custom_call.1} parent=103 // pred_check
          %p793 = pneg %p157
        $region122: #{tpu_custom_call.1} parent=103 // pred_check_branch
          %795 = sbr.rel (%p793) target = $region124
        $region123: #{tpu_custom_call.1} parent=103 // pred_region
          %797 = dma.done [#allocation9], 3072
        $region124: #{tpu_custom_call.1} parent=103 // pred_fallthru
          _
        // Predicated region
        $region125: #{tpu_custom_call.1} parent=103 // pred_check
          %p798 = pneg %p178
        $region126: #{tpu_custom_call.1} parent=103 // pred_check_branch
          %800 = sbr.rel (%p798) target = $region128
        $region127: #{tpu_custom_call.1} parent=103 // pred_region
          %802 = dma.done [#allocation12], 3072
        $region128: #{tpu_custom_call.1} parent=103 // pred_fallthru
          _
        // Predicated region
        $region129: #{tpu_custom_call.1} parent=103 // pred_check
          %p803 = pneg %p199
        $region130: #{tpu_custom_call.1} parent=103 // pred_check_branch
          %805 = sbr.rel (%p803) target = $region132
        $region131: #{tpu_custom_call.1} parent=103 // pred_region
          %807 = dma.done [#allocation12], 16
        $region132: #{tpu_custom_call.1} parent=103 // pred_fallthru
          _
        // Predicated region
        $region133: #{tpu_custom_call.1} parent=103 // pred_check
          %p808 = pneg %p220
        $region134: #{tpu_custom_call.1} parent=103 // pred_check_branch
          %810 = sbr.rel (%p808) target = $region136
        $region135: #{tpu_custom_call.1} parent=103 // pred_region
          %812 = dma.done [#allocation15], 256
        $region136: #{tpu_custom_call.1} parent=103 // pred_fallthru
          _
        // Predicated region
        $region137: #{tpu_custom_call.1} parent=103 // pred_check
          %p813 = pneg %p241
        $region138: #{tpu_custom_call.1} parent=103 // pred_check_branch
          %815 = sbr.rel (%p813) target = $region140
        $region139: #{tpu_custom_call.1} parent=103 // pred_region
          %817 = dma.done [#allocation15], 256
        $region140: #{tpu_custom_call.1} parent=103 // pred_fallthru
          _
        // Predicated region
        $region141: #{tpu_custom_call.1} parent=103 // pred_check
          %p818 = pneg %p283
        $region142: #{tpu_custom_call.1} parent=103 // pred_check_branch
          %820 = sbr.rel (%p818) target = $region144
        $region143: #{tpu_custom_call.1} parent=103 // pred_region
          %822 = dma.done [#allocation18], 128
        $region144: #{tpu_custom_call.1} parent=103 // pred_fallthru
          _
        // Predicated region
        $region145: #{tpu_custom_call.1} parent=103 // pred_check
          %p823 = pneg %p346
        $region146: #{tpu_custom_call.1} parent=103 // pred_check_branch
          %825 = sbr.rel (%p823) target = $region148
        $region147: #{tpu_custom_call.1} parent=103 // pred_region
          %827 = dma.done [#allocation18], 3072
        $region148: #{tpu_custom_call.1} parent=103 // pred_fallthru
          _
        // Predicated region
        $region149: #{tpu_custom_call.1} parent=103 // pred_check
          %p828 = pneg %p388
        $region150: #{tpu_custom_call.1} parent=103 // pred_check_branch
          %830 = sbr.rel (%p828) target = $region152
        $region151: #{tpu_custom_call.1} parent=103 // pred_region
          %832 = dma.done [#allocation21], 128
        $region152: #{tpu_custom_call.1} parent=103 // pred_fallthru
          _
        // Predicated region
        $region153: #{tpu_custom_call.1} parent=103 // pred_check
          %p833 = pneg %p409
        $region154: #{tpu_custom_call.1} parent=103 // pred_check_branch
          %835 = sbr.rel (%p833) target = $region156
        $region155: #{tpu_custom_call.1} parent=103 // pred_region
          %837 = dma.done [#allocation21], 128
        $region156: #{tpu_custom_call.1} parent=103 // pred_fallthru
          _
        // Predicated region
        $region157: #{tpu_custom_call.1} parent=103 // pred_check
          %p838 = pneg %p472
        $region158: #{tpu_custom_call.1} parent=103 // pred_check_branch
          %840 = sbr.rel (%p838) target = $region160
        $region159: #{tpu_custom_call.1} parent=103 // pred_region
          %842 = dma.done [#allocation24], 3072
        $region160: #{tpu_custom_call.1} parent=103 // pred_fallthru
          _
        %s843 = sand.u32 %s55, 1
        %s844 = scalar_lea.sflag [#allocation3], %s843
        %s845 = sand.u32 %s55, 1
        %s846 = smul.addr %s845, 16
        %s847 = scalar_lea.vmem [#allocation2], %s846
        %p848 = pneg %p68
        %p849 = pneg %p65
        %s850 = sand.u32 %s47, 1
        %s851 = scalar_lea.sflag [#allocation6], %s850
        %s852 = sand.u32 %s81, 1
        %s853 = smul.addr %s852, 8
        %s854 = scalar_lea.vmem [#allocation5], %s853
        %p855 = pneg %p94
        %p856 = pneg %p91
        %p857 = pneg %p115
        %p858 = pneg %p112
        %p859 = pneg %p136
        %p860 = pneg %p133
        %p861 = pneg %p157
        %p862 = pneg %p154
        %p863 = pneg %p178
        %p864 = pneg %p175
        %p865 = pneg %p199
        %p866 = pneg %p196
        %p867 = pneg %p220
        %p868 = pneg %p217
        %p869 = pneg %p241
        %p870 = pneg %p238
        %p871 = pneg %p262
        %p872 = pneg %p259
        %p873 = pneg %p283
        %p874 = pneg %p280
        %p875 = pneg %p304
        %p876 = pneg %p301
        %p877 = pneg %p325
        %p878 = pneg %p322
        %p879 = pneg %p346
        %p880 = pneg %p343
        %p881 = pneg %p367
        %p882 = pneg %p364
        %p883 = pneg %p388
        %p884 = pneg %p385
        %p885 = pneg %p409
        %p886 = pneg %p406
        %p887 = pneg %p430
        %p888 = pneg %p427
        %p889 = pneg %p451
        %p890 = pneg %p448
        %p891 = pneg %p472
        %p892 = pneg %p469
        %p893 = pneg %p493
        %p894 = pneg %p490
        %p895 = pneg %p519
        %p896 = pneg %p516
        %s897 = sand.u32 %s506, 1
        %s898 = scalar_lea.sflag [#allocation4], %s897
        %s899 = sand.u32 %s506, 1
        %s900 = smul.addr %s899, 8
        %s901 = scalar_lea.vmem [#allocation25], %s900
        %s902 = smul.u32 2, %s47
        %v903 = vld [vmem:[%s767] sm:$0xff]
        %v904 = vld [vmem:[%s767 + $0x8] sm:$0xff]
        %v905 = vld [vmem:[#allocation7] sm:$0x1]
        %v907 = vperm.slane %v905, 0
        %v909 = vmul.f32 %v903, %v907
        %v910 = vmul.f32 %v904, %v907
        %v911 = vld [vmem:[#allocation8] sm:$0x1]
        %v913 = vperm.slane %v911, 0
        %v915 = vadd.f32 %v909, %v913
        %v916 = vadd.f32 %v910, %v913
        %v917 = vmax.f32 %v915, 0.0
        %v918 = vmax.f32 %v916, 0.0
        %v919 = vld [vmem:[#allocation14] sm:$0xff]
        %v920 = vld [vmem:[#allocation14 + $0x8] sm:$0xff]
        %vm921 = vcmask 130048
        %v923 = vsel %vm921, %v919, 0
        %v926 = vsel %vm921, %v920, 0
        %928 = vmatpush.msra.mxu0 0.0
        %929 = vmatpush.msra.mxu0 0.0
        %930 = vmatpush.msra.mxu0 0.0
        %931 = vmatpush.msra.mxu0 0.0
        %932 = vmatpush.msra.mxu0 0.0
        %933 = vmatpush.msra.mxu0 0.0
        %934 = vmatpush.msra.mxu0 0.0
        %935 = vmatpush.msra.mxu0 0.0
        %936 = vmatpush.msra.mxu0 0.0
        %937 = vmatpush.msra.mxu0 0.0
        %938 = vmatpush.msra.mxu0 0.0
        %939 = vmatpush.msra.mxu0 0.0
        %940 = vmatpush.msra.mxu0 0.0
        %941 = vmatpush.msra.mxu0 0.0
        %942 = vmatpush.msra.mxu0 %v918
        %943 = vmatpush.msra.mxu0 %v917
        %944 = vmatmul.f32.gmra.mxu0 %v923
        %v945 = vpop.f32.mrf.mxu0
        %v946 = vadd.f32 0.0, %v945
        %947 = vmatmul.f32.gmra.mxu0 %v926
        %v948 = vpop.f32.mrf.mxu0
        %v949 = vadd.f32 0.0, %v948
        %950 = vdwg.mxu0
        %v951 = vld [vmem:[#allocation16] sm:$0xff]
        %v952 = vld [vmem:[#allocation16 + $0x8] sm:$0xff]
        %v954 = vsel %vm921, %v951, 0
        %v957 = vsel %vm921, %v952, 0
        %959 = vmatpush.msra.mxu0 0.0
        %960 = vmatpush.msra.mxu0 0.0
        %961 = vmatpush.msra.mxu0 0.0
        %962 = vmatpush.msra.mxu0 0.0
        %963 = vmatpush.msra.mxu0 0.0
        %964 = vmatpush.msra.mxu0 0.0
        %965 = vmatpush.msra.mxu0 0.0
        %966 = vmatpush.msra.mxu0 0.0
        %967 = vmatpush.msra.mxu0 0.0
        %968 = vmatpush.msra.mxu0 0.0
        %969 = vmatpush.msra.mxu0 0.0
        %970 = vmatpush.msra.mxu0 0.0
        %971 = vmatpush.msra.mxu0 0.0
        %972 = vmatpush.msra.mxu0 0.0
        %973 = vmatpush.msra.mxu0 %v918
        %974 = vmatpush.msra.mxu0 %v917
        %975 = vmatmul.f32.gmra.mxu0 %v954
        %v976 = vpop.f32.mrf.mxu0
        %v977 = vadd.f32 0.0, %v976
        %978 = vmatmul.f32.gmra.mxu0 %v957
        %v979 = vpop.f32.mrf.mxu0
        %v980 = vadd.f32 0.0, %v979
        %981 = vdwg.mxu0
        %v982 = vld [vmem:[#allocation10] sm:$0xff]
        %v983 = vld [vmem:[#allocation10 + $0x8] sm:$0xff]
        %v984 = vld [vmem:[#allocation10 + $0x10] sm:$0xff]
        %v985 = vld [vmem:[#allocation10 + $0x18] sm:$0xff]
        %v986 = vld [vmem:[#allocation10 + $0x20] sm:$0xff]
        %v987 = vld [vmem:[#allocation10 + $0x28] sm:$0xff]
        %v988 = vld [vmem:[#allocation10 + $0x30] sm:$0xff]
        %v989 = vld [vmem:[#allocation10 + $0x38] sm:$0xff]
        %s990 = scalar_lea.vmem [#allocation10], 64
        %v991 = vld [vmem:[%s990] sm:$0xff]
        %v992 = vld [vmem:[%s990 + $0x8] sm:$0xff]
        %v993 = vld [vmem:[%s990 + $0x10] sm:$0xff]
        %v994 = vld [vmem:[%s990 + $0x18] sm:$0xff]
        %v995 = vld [vmem:[%s990 + $0x20] sm:$0xff]
        %v996 = vld [vmem:[%s990 + $0x28] sm:$0xff]
        %v997 = vld [vmem:[%s990 + $0x30] sm:$0xff]
        %v998 = vld [vmem:[%s990 + $0x38] sm:$0xff]
        %vm999 = vcmask 523264
        %v1001 = vsel %vm999, %v917, 0
        %v1004 = vsel %vm999, %v918, 0
        %1006 = vmatpush.msra.mxu0 0.0
        %1007 = vmatpush.msra.mxu0 0.0
        %1008 = vmatpush.msra.mxu0 0.0
        %1009 = vmatpush.msra.mxu0 0.0
        %1010 = vmatpush.msra.mxu0 0.0
        %1011 = vmatpush.msra.mxu0 0.0
        %1012 = vmatpush.msra.mxu0 0.0
        %1013 = vmatpush.msra.mxu0 0.0
        %1014 = vmatpush.msra.mxu0 %v998
        %1015 = vmatpush.msra.mxu0 %v997
        %1016 = vmatpush.msra.mxu0 %v996
        %1017 = vmatpush.msra.mxu0 %v995
        %1018 = vmatpush.msra.mxu0 %v994
        %1019 = vmatpush.msra.mxu0 %v993
        %1020 = vmatpush.msra.mxu0 %v992
        %1021 = vmatpush.msra.mxu0 %v991
        %1022 = vmatmul.f32.gmra.mxu0 %v1001
        %v1023 = vpop.f32.mrf.mxu0
        %v1024 = vadd.f32 0.0, %v1023
        %1025 = vmatmul.f32.gmra.mxu0 %v1004
        %v1026 = vpop.f32.mrf.mxu0
        %v1027 = vadd.f32 0.0, %v1026
        %1028 = vdwg.mxu0
        %v1030 = vsel %vm999, %v946, 0
        %v1033 = vsel %vm999, %v949, 0
        %1035 = vmatpush.msra.mxu0 0.0
        %1036 = vmatpush.msra.mxu0 0.0
        %1037 = vmatpush.msra.mxu0 0.0
        %1038 = vmatpush.msra.mxu0 0.0
        %1039 = vmatpush.msra.mxu0 0.0
        %1040 = vmatpush.msra.mxu0 0.0
        %1041 = vmatpush.msra.mxu0 0.0
        %1042 = vmatpush.msra.mxu0 0.0
        %1043 = vmatpush.msra.mxu0 %v989
        %1044 = vmatpush.msra.mxu0 %v988
        %1045 = vmatpush.msra.mxu0 %v987
        %1046 = vmatpush.msra.mxu0 %v986
        %1047 = vmatpush.msra.mxu0 %v985
        %1048 = vmatpush.msra.mxu0 %v984
        %1049 = vmatpush.msra.mxu0 %v983
        %1050 = vmatpush.msra.mxu0 %v982
        %1051 = vmatmul.f32.gmra.mxu0 %v1030
        %v1052 = vpop.f32.mrf.mxu0
        %v1053 = vadd.f32 %v1024, %v1052
        %1054 = vmatmul.f32.gmra.mxu0 %v1033
        %v1055 = vpop.f32.mrf.mxu0
        %v1056 = vadd.f32 %v1027, %v1055
        %1057 = vdwg.mxu0
        %s1058 = scalar_lea.vmem [#allocation10], 128
        %v1059 = vld [vmem:[%s1058] sm:$0xff]
        %v1060 = vld [vmem:[%s1058 + $0x8] sm:$0xff]
        %v1061 = vld [vmem:[%s1058 + $0x10] sm:$0xff]
        %v1062 = vld [vmem:[%s1058 + $0x18] sm:$0xff]
        %v1063 = vld [vmem:[%s1058 + $0x20] sm:$0xff]
        %v1064 = vld [vmem:[%s1058 + $0x28] sm:$0xff]
        %v1065 = vld [vmem:[%s1058 + $0x30] sm:$0xff]
        %v1066 = vld [vmem:[%s1058 + $0x38] sm:$0xff]
        %v1068 = vsel %vm999, %v977, 0
        %v1071 = vsel %vm999, %v980, 0
        %1073 = vmatpush.msra.mxu0 0.0
        %1074 = vmatpush.msra.mxu0 0.0
        %1075 = vmatpush.msra.mxu0 0.0
        %1076 = vmatpush.msra.mxu0 0.0
        %1077 = vmatpush.msra.mxu0 0.0
        %1078 = vmatpush.msra.mxu0 0.0
        %1079 = vmatpush.msra.mxu0 0.0
        %1080 = vmatpush.msra.mxu0 0.0
        %1081 = vmatpush.msra.mxu0 %v1066
        %1082 = vmatpush.msra.mxu0 %v1065
        %1083 = vmatpush.msra.mxu0 %v1064
        %1084 = vmatpush.msra.mxu0 %v1063
        %1085 = vmatpush.msra.mxu0 %v1062
        %1086 = vmatpush.msra.mxu0 %v1061
        %1087 = vmatpush.msra.mxu0 %v1060
        %1088 = vmatpush.msra.mxu0 %v1059
        %1089 = vmatmul.f32.gmra.mxu0 %v1068
        %v1090 = vpop.f32.mrf.mxu0
        %v1091 = vadd.f32 0.0, %v1090
        %1092 = vmatmul.f32.gmra.mxu0 %v1071
        %v1093 = vpop.f32.mrf.mxu0
        %v1094 = vadd.f32 0.0, %v1093
        %1095 = vdwg.mxu0
        %v1096 = vadd.f32 %v1053, %v1091
        %v1097 = vadd.f32 %v1056, %v1094
        %v1098 = vld [vmem:[#allocation11] sm:$0xff]
        %v1099 = vld [vmem:[#allocation11 + $0x8] sm:$0xff]
        %v1100 = vld [vmem:[#allocation11 + $0x10] sm:$0xff]
        %v1101 = vld [vmem:[#allocation11 + $0x18] sm:$0xff]
        %v1102 = vld [vmem:[#allocation11 + $0x20] sm:$0xff]
        %v1103 = vld [vmem:[#allocation11 + $0x28] sm:$0xff]
        %v1104 = vld [vmem:[#allocation11 + $0x30] sm:$0xff]
        %v1105 = vld [vmem:[#allocation11 + $0x38] sm:$0xff]
        %s1106 = scalar_lea.vmem [#allocation11], 64
        %v1107 = vld [vmem:[%s1106] sm:$0xff]
        %v1108 = vld [vmem:[%s1106 + $0x8] sm:$0xff]
        %v1109 = vld [vmem:[%s1106 + $0x10] sm:$0xff]
        %v1110 = vld [vmem:[%s1106 + $0x18] sm:$0xff]
        %v1111 = vld [vmem:[%s1106 + $0x20] sm:$0xff]
        %v1112 = vld [vmem:[%s1106 + $0x28] sm:$0xff]
        %v1113 = vld [vmem:[%s1106 + $0x30] sm:$0xff]
        %v1114 = vld [vmem:[%s1106 + $0x38] sm:$0xff]
        %1115 = vmatpush.msra.mxu0 0.0
        %1116 = vmatpush.msra.mxu0 0.0
        %1117 = vmatpush.msra.mxu0 0.0
        %1118 = vmatpush.msra.mxu0 0.0
        %1119 = vmatpush.msra.mxu0 0.0
        %1120 = vmatpush.msra.mxu0 0.0
        %1121 = vmatpush.msra.mxu0 0.0
        %1122 = vmatpush.msra.mxu0 0.0
        %1123 = vmatpush.msra.mxu0 %v1114
        %1124 = vmatpush.msra.mxu0 %v1113
        %1125 = vmatpush.msra.mxu0 %v1112
        %1126 = vmatpush.msra.mxu0 %v1111
        %1127 = vmatpush.msra.mxu0 %v1110
        %1128 = vmatpush.msra.mxu0 %v1109
        %1129 = vmatpush.msra.mxu0 %v1108
        %1130 = vmatpush.msra.mxu0 %v1107
        %1131 = vmatmul.f32.gmra.mxu0 %v1001
        %v1132 = vpop.f32.mrf.mxu0
        %v1133 = vadd.f32 0.0, %v1132
        %1134 = vmatmul.f32.gmra.mxu0 %v1004
        %v1135 = vpop.f32.mrf.mxu0
        %v1136 = vadd.f32 0.0, %v1135
        %1137 = vdwg.mxu0
        %1138 = vmatpush.msra.mxu0 0.0
        %1139 = vmatpush.msra.mxu0 0.0
        %1140 = vmatpush.msra.mxu0 0.0
        %1141 = vmatpush.msra.mxu0 0.0
        %1142 = vmatpush.msra.mxu0 0.0
        %1143 = vmatpush.msra.mxu0 0.0
        %1144 = vmatpush.msra.mxu0 0.0
        %1145 = vmatpush.msra.mxu0 0.0
        %1146 = vmatpush.msra.mxu0 %v1105
        %1147 = vmatpush.msra.mxu0 %v1104
        %1148 = vmatpush.msra.mxu0 %v1103
        %1149 = vmatpush.msra.mxu0 %v1102
        %1150 = vmatpush.msra.mxu0 %v1101
        %1151 = vmatpush.msra.mxu0 %v1100
        %1152 = vmatpush.msra.mxu0 %v1099
        %1153 = vmatpush.msra.mxu0 %v1098
        %1154 = vmatmul.f32.gmra.mxu0 %v1030
        %v1155 = vpop.f32.mrf.mxu0
        %v1156 = vadd.f32 %v1133, %v1155
        %1157 = vmatmul.f32.gmra.mxu0 %v1033
        %v1158 = vpop.f32.mrf.mxu0
        %v1159 = vadd.f32 %v1136, %v1158
        %1160 = vdwg.mxu0
        %s1161 = scalar_lea.vmem [#allocation11], 128
        %v1162 = vld [vmem:[%s1161] sm:$0xff]
        %v1163 = vld [vmem:[%s1161 + $0x8] sm:$0xff]
        %v1164 = vld [vmem:[%s1161 + $0x10] sm:$0xff]
        %v1165 = vld [vmem:[%s1161 + $0x18] sm:$0xff]
        %v1166 = vld [vmem:[%s1161 + $0x20] sm:$0xff]
        %v1167 = vld [vmem:[%s1161 + $0x28] sm:$0xff]
        %v1168 = vld [vmem:[%s1161 + $0x30] sm:$0xff]
        %v1169 = vld [vmem:[%s1161 + $0x38] sm:$0xff]
        %1170 = vmatpush.msra.mxu0 0.0
        %1171 = vmatpush.msra.mxu0 0.0
        %1172 = vmatpush.msra.mxu0 0.0
        %1173 = vmatpush.msra.mxu0 0.0
        %1174 = vmatpush.msra.mxu0 0.0
        %1175 = vmatpush.msra.mxu0 0.0
        %1176 = vmatpush.msra.mxu0 0.0
        %1177 = vmatpush.msra.mxu0 0.0
        %1178 = vmatpush.msra.mxu0 %v1169
        %1179 = vmatpush.msra.mxu0 %v1168
        %1180 = vmatpush.msra.mxu0 %v1167
        %1181 = vmatpush.msra.mxu0 %v1166
        %1182 = vmatpush.msra.mxu0 %v1165
        %1183 = vmatpush.msra.mxu0 %v1164
        %1184 = vmatpush.msra.mxu0 %v1163
        %1185 = vmatpush.msra.mxu0 %v1162
        %1186 = vmatmul.f32.gmra.mxu0 %v1068
        %v1187 = vpop.f32.mrf.mxu0
        %v1188 = vadd.f32 0.0, %v1187
        %1189 = vmatmul.f32.gmra.mxu0 %v1071
        %v1190 = vpop.f32.mrf.mxu0
        %v1191 = vadd.f32 0.0, %v1190
        %1192 = vdwg.mxu0
        %v1193 = vadd.f32 %v1156, %v1188
        %v1194 = vadd.f32 %v1159, %v1191
        %v1195 = vmax.f32 %v1096, %v1193
        %v1196 = vmax.f32 %v1097, %v1194
        %v1197 = vld [vmem:[%s9] sm:$0xff]
        %v1199 = vsel %vm921, %v1197, 0
        %1201 = vmatpush.msra.mxu0 0.0
        %1202 = vmatpush.msra.mxu0 0.0
        %1203 = vmatpush.msra.mxu0 0.0
        %1204 = vmatpush.msra.mxu0 0.0
        %1205 = vmatpush.msra.mxu0 0.0
        %1206 = vmatpush.msra.mxu0 0.0
        %1207 = vmatpush.msra.mxu0 0.0
        %1208 = vmatpush.msra.mxu0 0.0
        %1209 = vmatpush.msra.mxu0 0.0
        %1210 = vmatpush.msra.mxu0 0.0
        %1211 = vmatpush.msra.mxu0 0.0
        %1212 = vmatpush.msra.mxu0 0.0
        %1213 = vmatpush.msra.mxu0 0.0
        %1214 = vmatpush.msra.mxu0 0.0
        %1215 = vmatpush.msra.mxu0 %v1196
        %1216 = vmatpush.msra.mxu0 %v1195
        %1217 = vmatmul.f32.gmra.mxu0 %v1199
        %v1218 = vpop.f32.mrf.mxu0
        %v1219 = vadd.f32 0.0, %v1218
        %1220 = vdwg.mxu0
        %v1221 = vld [vmem:[#allocation17] sm:$0xff]
        %v1223 = vsel %vm921, %v1221, 0
        %1225 = vmatpush.msra.mxu0 0.0
        %1226 = vmatpush.msra.mxu0 0.0
        %1227 = vmatpush.msra.mxu0 0.0
        %1228 = vmatpush.msra.mxu0 0.0
        %1229 = vmatpush.msra.mxu0 0.0
        %1230 = vmatpush.msra.mxu0 0.0
        %1231 = vmatpush.msra.mxu0 0.0
        %1232 = vmatpush.msra.mxu0 0.0
        %1233 = vmatpush.msra.mxu0 0.0
        %1234 = vmatpush.msra.mxu0 0.0
        %1235 = vmatpush.msra.mxu0 0.0
        %1236 = vmatpush.msra.mxu0 0.0
        %1237 = vmatpush.msra.mxu0 0.0
        %1238 = vmatpush.msra.mxu0 0.0
        %1239 = vmatpush.msra.mxu0 %v1196
        %1240 = vmatpush.msra.mxu0 %v1195
        %1241 = vmatmul.f32.gmra.mxu0 %v1223
        %v1242 = vpop.f32.mrf.mxu0
        %v1243 = vadd.f32 0.0, %v1242
        %1244 = vdwg.mxu0
        %v1245 = vmax.f32 %v1219, %v1243
        %v1246 = vld [vmem:[#allocation13] sm:$0x1]
        %v1248 = vperm.slane %v1246, 0
        %v1250 = vadd.f32 %v1245, %v1248
        %v1251 = vld [vmem:[%s777] sm:$0xff]
        %v1252 = vld [vmem:[%s11] sm:$0x1]
        %v1254 = vperm.slane %v1252, 0
        %v1256 = vmul.f32 %v1251, %v1254
        %v1257 = vld [vmem:[%s12] sm:$0x1]
        %v1259 = vperm.slane %v1257, 0
        %v1261 = vadd.f32 %v1256, %v1259
        %v1262 = vmax.f32 %v1261, 0.0
        %v1263 = vld [vmem:[#allocation20] sm:$0xff]
        %vm1264 = vcmask 64512
        %v1266 = vsel %vm1264, %v1263, 0
        %1268 = vmatpush.msra.mxu0 0.0
        %1269 = vmatpush.msra.mxu0 0.0
        %1270 = vmatpush.msra.mxu0 0.0
        %1271 = vmatpush.msra.mxu0 0.0
        %1272 = vmatpush.msra.mxu0 0.0
        %1273 = vmatpush.msra.mxu0 0.0
        %1274 = vmatpush.msra.mxu0 0.0
        %1275 = vmatpush.msra.mxu0 0.0
        %1276 = vmatpush.msra.mxu0 0.0
        %1277 = vmatpush.msra.mxu0 0.0
        %1278 = vmatpush.msra.mxu0 0.0
        %1279 = vmatpush.msra.mxu0 0.0
        %1280 = vmatpush.msra.mxu0 0.0
        %1281 = vmatpush.msra.mxu0 0.0
        %1282 = vmatpush.msra.mxu0 0.0
        %1283 = vmatpush.msra.mxu0 %v1262
        %1284 = vmatmul.f32.gmra.mxu0 %v1266
        %v1285 = vpop.f32.mrf.mxu0
        %v1286 = vadd.f32 0.0, %v1285
        %1287 = vdwg.mxu0
        %v1288 = vld [vmem:[#allocation22] sm:$0xff]
        %v1290 = vsel %vm1264, %v1288, 0
        %1292 = vmatpush.msra.mxu0 0.0
        %1293 = vmatpush.msra.mxu0 0.0
        %1294 = vmatpush.msra.mxu0 0.0
        %1295 = vmatpush.msra.mxu0 0.0
        %1296 = vmatpush.msra.mxu0 0.0
        %1297 = vmatpush.msra.mxu0 0.0
        %1298 = vmatpush.msra.mxu0 0.0
        %1299 = vmatpush.msra.mxu0 0.0
        %1300 = vmatpush.msra.mxu0 0.0
        %1301 = vmatpush.msra.mxu0 0.0
        %1302 = vmatpush.msra.mxu0 0.0
        %1303 = vmatpush.msra.mxu0 0.0
        %1304 = vmatpush.msra.mxu0 0.0
        %1305 = vmatpush.msra.mxu0 0.0
        %1306 = vmatpush.msra.mxu0 0.0
        %1307 = vmatpush.msra.mxu0 %v1262
        %1308 = vmatmul.f32.gmra.mxu0 %v1290
        %v1309 = vpop.f32.mrf.mxu0
        %v1310 = vadd.f32 0.0, %v1309
        %1311 = vdwg.mxu0
        %v1312 = vld [vmem:[#allocation19] sm:$0xff]
        %v1313 = vld [vmem:[#allocation19 + $0x8] sm:$0xff]
        %v1314 = vld [vmem:[#allocation19 + $0x10] sm:$0xff]
        %v1315 = vld [vmem:[#allocation19 + $0x18] sm:$0xff]
        %v1316 = vld [vmem:[#allocation19 + $0x20] sm:$0xff]
        %v1317 = vld [vmem:[#allocation19 + $0x28] sm:$0xff]
        %v1318 = vld [vmem:[#allocation19 + $0x30] sm:$0xff]
        %v1319 = vld [vmem:[#allocation19 + $0x38] sm:$0xff]
        %s1320 = scalar_lea.vmem [#allocation19], 64
        %v1321 = vld [vmem:[%s1320] sm:$0xff]
        %v1322 = vld [vmem:[%s1320 + $0x8] sm:$0xff]
        %v1323 = vld [vmem:[%s1320 + $0x10] sm:$0xff]
        %v1324 = vld [vmem:[%s1320 + $0x18] sm:$0xff]
        %v1325 = vld [vmem:[%s1320 + $0x20] sm:$0xff]
        %v1326 = vld [vmem:[%s1320 + $0x28] sm:$0xff]
        %v1327 = vld [vmem:[%s1320 + $0x30] sm:$0xff]
        %v1328 = vld [vmem:[%s1320 + $0x38] sm:$0xff]
        %v1330 = vsel %vm999, %v1262, 0
        %1332 = vmatpush.msra.mxu0 0.0
        %1333 = vmatpush.msra.mxu0 0.0
        %1334 = vmatpush.msra.mxu0 0.0
        %1335 = vmatpush.msra.mxu0 0.0
        %1336 = vmatpush.msra.mxu0 0.0
        %1337 = vmatpush.msra.mxu0 0.0
        %1338 = vmatpush.msra.mxu0 0.0
        %1339 = vmatpush.msra.mxu0 0.0
        %1340 = vmatpush.msra.mxu0 %v1328
        %1341 = vmatpush.msra.mxu0 %v1327
        %1342 = vmatpush.msra.mxu0 %v1326
        %1343 = vmatpush.msra.mxu0 %v1325
        %1344 = vmatpush.msra.mxu0 %v1324
        %1345 = vmatpush.msra.mxu0 %v1323
        %1346 = vmatpush.msra.mxu0 %v1322
        %1347 = vmatpush.msra.mxu0 %v1321
        %1348 = vmatmul.f32.gmra.mxu0 %v1330
        %v1349 = vpop.f32.mrf.mxu0
        %v1350 = vadd.f32 0.0, %v1349
        %1351 = vdwg.mxu0
        %v1353 = vsel %vm999, %v1286, 0
        %1355 = vmatpush.msra.mxu0 0.0
        %1356 = vmatpush.msra.mxu0 0.0
        %1357 = vmatpush.msra.mxu0 0.0
        %1358 = vmatpush.msra.mxu0 0.0
        %1359 = vmatpush.msra.mxu0 0.0
        %1360 = vmatpush.msra.mxu0 0.0
        %1361 = vmatpush.msra.mxu0 0.0
        %1362 = vmatpush.msra.mxu0 0.0
        %1363 = vmatpush.msra.mxu0 %v1319
        %1364 = vmatpush.msra.mxu0 %v1318
        %1365 = vmatpush.msra.mxu0 %v1317
        %1366 = vmatpush.msra.mxu0 %v1316
        %1367 = vmatpush.msra.mxu0 %v1315
        %1368 = vmatpush.msra.mxu0 %v1314
        %1369 = vmatpush.msra.mxu0 %v1313
        %1370 = vmatpush.msra.mxu0 %v1312
        %1371 = vmatmul.f32.gmra.mxu0 %v1353
        %v1372 = vpop.f32.mrf.mxu0
        %v1373 = vadd.f32 %v1350, %v1372
        %1374 = vdwg.mxu0
        %s1375 = scalar_lea.vmem [#allocation19], 128
        %v1376 = vld [vmem:[%s1375] sm:$0xff]
        %v1377 = vld [vmem:[%s1375 + $0x8] sm:$0xff]
        %v1378 = vld [vmem:[%s1375 + $0x10] sm:$0xff]
        %v1379 = vld [vmem:[%s1375 + $0x18] sm:$0xff]
        %v1380 = vld [vmem:[%s1375 + $0x20] sm:$0xff]
        %v1381 = vld [vmem:[%s1375 + $0x28] sm:$0xff]
        %v1382 = vld [vmem:[%s1375 + $0x30] sm:$0xff]
        %v1383 = vld [vmem:[%s1375 + $0x38] sm:$0xff]
        %v1385 = vsel %vm999, %v1310, 0
        %1387 = vmatpush.msra.mxu0 0.0
        %1388 = vmatpush.msra.mxu0 0.0
        %1389 = vmatpush.msra.mxu0 0.0
        %1390 = vmatpush.msra.mxu0 0.0
        %1391 = vmatpush.msra.mxu0 0.0
        %1392 = vmatpush.msra.mxu0 0.0
        %1393 = vmatpush.msra.mxu0 0.0
        %1394 = vmatpush.msra.mxu0 0.0
        %1395 = vmatpush.msra.mxu0 %v1383
        %1396 = vmatpush.msra.mxu0 %v1382
        %1397 = vmatpush.msra.mxu0 %v1381
        %1398 = vmatpush.msra.mxu0 %v1380
        %1399 = vmatpush.msra.mxu0 %v1379
        %1400 = vmatpush.msra.mxu0 %v1378
        %1401 = vmatpush.msra.mxu0 %v1377
        %1402 = vmatpush.msra.mxu0 %v1376
        %1403 = vmatmul.f32.gmra.mxu0 %v1385
        %v1404 = vpop.f32.mrf.mxu0
        %v1405 = vadd.f32 0.0, %v1404
        %1406 = vdwg.mxu0
        %v1407 = vadd.f32 %v1373, %v1405
        %v1408 = vld [vmem:[%s14] sm:$0x1]
        %v1410 = vperm.slane %v1408, 0
        %v1412 = vadd.f32 %v1407, %v1410
        %v1413 = vadd.f32 %v1250, %v1412
        %v1414 = vld [vmem:[%s17] sm:$0x1]
        %v1416 = vperm.slane %v1414, 0
        %v1418 = vmul.f32 %v1413, %v1416
        %v1419 = vld [vmem:[%s18] sm:$0x1]
        %v1421 = vperm.slane %v1419, 0
        %v1423 = vadd.f32 %v1418, %v1421
        %v1424 = vmax.f32 %v1423, 0.0
        %1425 = vmatpush.msra.mxu0 0.0
        %1426 = vmatpush.msra.mxu0 0.0
        %1427 = vmatpush.msra.mxu0 0.0
        %1428 = vmatpush.msra.mxu0 0.0
        %1429 = vmatpush.msra.mxu0 0.0
        %1430 = vmatpush.msra.mxu0 0.0
        %1431 = vmatpush.msra.mxu0 0.0
        %1432 = vmatpush.msra.mxu0 0.0
        %1433 = vmatpush.msra.mxu0 0.0
        %1434 = vmatpush.msra.mxu0 0.0
        %1435 = vmatpush.msra.mxu0 0.0
        %1436 = vmatpush.msra.mxu0 0.0
        %1437 = vmatpush.msra.mxu0 0.0
        %1438 = vmatpush.msra.mxu0 0.0
        %1439 = vmatpush.msra.mxu0 0.0
        %1440 = vmatpush.msra.mxu0 %v1424
        %1441 = vmatmul.f32.gmra.mxu0 %v1266
        %v1442 = vpop.f32.mrf.mxu0
        %v1443 = vadd.f32 0.0, %v1442
        %1444 = vdwg.mxu0
        %1445 = vmatpush.msra.mxu0 0.0
        %1446 = vmatpush.msra.mxu0 0.0
        %1447 = vmatpush.msra.mxu0 0.0
        %1448 = vmatpush.msra.mxu0 0.0
        %1449 = vmatpush.msra.mxu0 0.0
        %1450 = vmatpush.msra.mxu0 0.0
        %1451 = vmatpush.msra.mxu0 0.0
        %1452 = vmatpush.msra.mxu0 0.0
        %1453 = vmatpush.msra.mxu0 0.0
        %1454 = vmatpush.msra.mxu0 0.0
        %1455 = vmatpush.msra.mxu0 0.0
        %1456 = vmatpush.msra.mxu0 0.0
        %1457 = vmatpush.msra.mxu0 0.0
        %1458 = vmatpush.msra.mxu0 0.0
        %1459 = vmatpush.msra.mxu0 0.0
        %1460 = vmatpush.msra.mxu0 %v1424
        %1461 = vmatmul.f32.gmra.mxu0 %v1290
        %v1462 = vpop.f32.mrf.mxu0
        %v1463 = vadd.f32 0.0, %v1462
        %1464 = vdwg.mxu0
        %v1465 = vld [vmem:[#allocation23] sm:$0xff]
        %v1466 = vld [vmem:[#allocation23 + $0x8] sm:$0xff]
        %v1467 = vld [vmem:[#allocation23 + $0x10] sm:$0xff]
        %v1468 = vld [vmem:[#allocation23 + $0x18] sm:$0xff]
        %v1469 = vld [vmem:[#allocation23 + $0x20] sm:$0xff]
        %v1470 = vld [vmem:[#allocation23 + $0x28] sm:$0xff]
        %v1471 = vld [vmem:[#allocation23 + $0x30] sm:$0xff]
        %v1472 = vld [vmem:[#allocation23 + $0x38] sm:$0xff]
        %s1473 = scalar_lea.vmem [#allocation23], 64
        %v1474 = vld [vmem:[%s1473] sm:$0xff]
        %v1475 = vld [vmem:[%s1473 + $0x8] sm:$0xff]
        %v1476 = vld [vmem:[%s1473 + $0x10] sm:$0xff]
        %v1477 = vld [vmem:[%s1473 + $0x18] sm:$0xff]
        %v1478 = vld [vmem:[%s1473 + $0x20] sm:$0xff]
        %v1479 = vld [vmem:[%s1473 + $0x28] sm:$0xff]
        %v1480 = vld [vmem:[%s1473 + $0x30] sm:$0xff]
        %v1481 = vld [vmem:[%s1473 + $0x38] sm:$0xff]
        %v1483 = vsel %vm999, %v1424, 0
        %1485 = vmatpush.msra.mxu0 0.0
        %1486 = vmatpush.msra.mxu0 0.0
        %1487 = vmatpush.msra.mxu0 0.0
        %1488 = vmatpush.msra.mxu0 0.0
        %1489 = vmatpush.msra.mxu0 0.0
        %1490 = vmatpush.msra.mxu0 0.0
        %1491 = vmatpush.msra.mxu0 0.0
        %1492 = vmatpush.msra.mxu0 0.0
        %1493 = vmatpush.msra.mxu0 %v1481
        %1494 = vmatpush.msra.mxu0 %v1480
        %1495 = vmatpush.msra.mxu0 %v1479
        %1496 = vmatpush.msra.mxu0 %v1478
        %1497 = vmatpush.msra.mxu0 %v1477
        %1498 = vmatpush.msra.mxu0 %v1476
        %1499 = vmatpush.msra.mxu0 %v1475
        %1500 = vmatpush.msra.mxu0 %v1474
        %1501 = vmatmul.f32.gmra.mxu0 %v1483
        %v1502 = vpop.f32.mrf.mxu0
        %v1503 = vadd.f32 0.0, %v1502
        %1504 = vdwg.mxu0
        %v1506 = vsel %vm999, %v1443, 0
        %1508 = vmatpush.msra.mxu0 0.0
        %1509 = vmatpush.msra.mxu0 0.0
        %1510 = vmatpush.msra.mxu0 0.0
        %1511 = vmatpush.msra.mxu0 0.0
        %1512 = vmatpush.msra.mxu0 0.0
        %1513 = vmatpush.msra.mxu0 0.0
        %1514 = vmatpush.msra.mxu0 0.0
        %1515 = vmatpush.msra.mxu0 0.0
        %1516 = vmatpush.msra.mxu0 %v1472
        %1517 = vmatpush.msra.mxu0 %v1471
        %1518 = vmatpush.msra.mxu0 %v1470
        %1519 = vmatpush.msra.mxu0 %v1469
        %1520 = vmatpush.msra.mxu0 %v1468
        %1521 = vmatpush.msra.mxu0 %v1467
        %1522 = vmatpush.msra.mxu0 %v1466
        %1523 = vmatpush.msra.mxu0 %v1465
        %1524 = vmatmul.f32.gmra.mxu0 %v1506
        %v1525 = vpop.f32.mrf.mxu0
        %v1526 = vadd.f32 %v1503, %v1525
        %1527 = vdwg.mxu0
        %s1528 = scalar_lea.vmem [#allocation23], 128
        %v1529 = vld [vmem:[%s1528] sm:$0xff]
        %v1530 = vld [vmem:[%s1528 + $0x8] sm:$0xff]
        %v1531 = vld [vmem:[%s1528 + $0x10] sm:$0xff]
        %v1532 = vld [vmem:[%s1528 + $0x18] sm:$0xff]
        %v1533 = vld [vmem:[%s1528 + $0x20] sm:$0xff]
        %v1534 = vld [vmem:[%s1528 + $0x28] sm:$0xff]
        %v1535 = vld [vmem:[%s1528 + $0x30] sm:$0xff]
        %v1536 = vld [vmem:[%s1528 + $0x38] sm:$0xff]
        %v1538 = vsel %vm999, %v1463, 0
        %1540 = vmatpush.msra.mxu0 0.0
        %1541 = vmatpush.msra.mxu0 0.0
        %1542 = vmatpush.msra.mxu0 0.0
        %1543 = vmatpush.msra.mxu0 0.0
        %1544 = vmatpush.msra.mxu0 0.0
        %1545 = vmatpush.msra.mxu0 0.0
        %1546 = vmatpush.msra.mxu0 0.0
        %1547 = vmatpush.msra.mxu0 0.0
        %1548 = vmatpush.msra.mxu0 %v1536
        %1549 = vmatpush.msra.mxu0 %v1535
        %1550 = vmatpush.msra.mxu0 %v1534
        %1551 = vmatpush.msra.mxu0 %v1533
        %1552 = vmatpush.msra.mxu0 %v1532
        %1553 = vmatpush.msra.mxu0 %v1531
        %1554 = vmatpush.msra.mxu0 %v1530
        %1555 = vmatpush.msra.mxu0 %v1529
        %1556 = vmatmul.f32.gmra.mxu0 %v1538
        %v1557 = vpop.f32.mrf.mxu0
        %v1558 = vadd.f32 0.0, %v1557
        %1559 = vdwg.mxu0
        %v1560 = vadd.f32 %v1526, %v1558
        %v1561 = vld [vmem:[%s20] sm:$0x1]
        %v1563 = vperm.slane %v1561, 0
        %v1565 = vadd.f32 %v1560, %v1563
        %v1566 = vmul.f32 %v1565, %v1251
        %1567 = vst.msk [vmem:[%s901] sm:$0xff] %vm999, %v1566
        %s1568 = sand.u32 %s506, 1
        %s1569 = scalar_lea.sflag [#allocation4], %s1568
        %s1570 = sand.u32 %s506, 1
        %s1571 = smul.addr %s1570, 8
        %s1572 = scalar_lea.vmem [#allocation25], %s1571
        // Predicated region
        $region161: #{tpu_custom_call.1} parent=103 // pred_check
          %p1573 = pneg %p516
        $region162: #{tpu_custom_call.1} parent=103 // pred_check_branch
          %1575 = sbr.rel (%p1573) target = $region164
        $region163: #{tpu_custom_call.1} parent=103 // pred_region
          %1577 = vsyncadd %s1569, 0
          %s1578 = smul.addr %s47, 8
          %s1579 = scalar_lea.hbm %s21, %s1578
          %s1581 = sshll.u32 %s1572, 4
          %s1582 = int_to_ptr.vmem [resolvable:$true] %s1581
          %s1583 = sshll.u32 %s1579, 4
          %s1584 = int_to_ptr.hbm [resolvable:$true] %s1583
          %1586 = dma.vmem_to_hbm [thread:$0]  %s1582, 128, %s1584, %s1569
        $region164: #{tpu_custom_call.1} parent=103 // pred_fallthru
          _
      $region104: #{tpu_custom_call.1} parent=5 // pred_fallthru
        _
      %p1587 = scmp.le.s32.totalorder 2, %s42
      // Predicated region
      $region165: #{tpu_custom_call.1} parent=5 // pred_check
        %p1588 = pneg %p1587
      $region166: #{tpu_custom_call.1} parent=5 // pred_check_branch
        %1590 = sbr.rel (%p1588) target = $region168
      $region167: #{tpu_custom_call.1} parent=5 // pred_region
        %s1591 = ssub.s32 %s42, 2
        // Predicated region
        $region169: #{tpu_custom_call.1} parent=167 // pred_check
          %p1592 = pneg %p522
        $region170: #{tpu_custom_call.1} parent=167 // pred_check_branch
          %1594 = sbr.rel (%p1592) target = $region172
        $region171: #{tpu_custom_call.1} parent=167 // pred_region
          %s1595 = sand.u32 %s507, 1
          %s1596 = scalar_lea.sflag [#allocation4], %s1595
          %s1597 = sand.u32 %s507, 1
          %s1598 = smul.addr %s1597, 8
          %s1599 = scalar_lea.vmem [#allocation25], %s1598
          %1601 = dma.done %s1596, 128
        $region172: #{tpu_custom_call.1} parent=167 // pred_fallthru
          _
      $region168: #{tpu_custom_call.1} parent=5 // pred_fallthru
        _
    $region6: #{tpu_custom_call.1} parent=1 // loop_footer
      %s46 = sadd.s32 1, %s42
    $region7: #{tpu_custom_call.1} parent=1 // loop_footer_branch
      %41 = sbr.rel target = $region3
    $region8: #{tpu_custom_call.1} parent=1 // loop_exit
      _
    %1602 = vsyncpa [#allocation3], 1
    %s1603 = scalar_lea.sflag [#allocation3], 1
    %1604 = vsyncpa %s1603, 1
    %1605 = vsyncpa [#allocation6], 1
    %s1606 = scalar_lea.sflag [#allocation6], 1
    %1607 = vsyncpa %s1606, 1
    %1608 = vsyncpa [#allocation9], 1
    %1609 = vsyncpa [#allocation12], 1
    %1610 = vsyncpa [#allocation15], 1
    %1611 = vsyncpa [#allocation18], 1
    %1612 = vsyncpa [#allocation21], 1
    %1613 = vsyncpa [#allocation24], 1
    %1614 = vsyncpa [#allocation4], 1
    %s1615 = scalar_lea.sflag [#allocation4], 1
    %1616 = vsyncpa %s1615, 1

</llo_original>
